<compile_context>
chip_gen: v7x
topology: tpu7x:2x2x1
jax: 0.10.0
libtpu: 0.0.40
codegen_flags: <defaults>
</compile_context>

<pallas_src>
import functools

import jax
import jax.numpy as jnp
from jax.experimental import pallas as pl
from jax.experimental.pallas import tpu as pltpu


# ----------------------------------------------------------------------------
# Fused Pallas kernel: 2 conv blocks (conv+maxpool+leaky) + 3 linear layers.
# All activations are length-major (L, TB, C) register values.
# ----------------------------------------------------------------------------
def _conv_critic_kernel(x_ref, w0_ref, b0_ref, w1_ref, b1_ref,
                        lw0_ref, lb0_ref, lw1_ref, lb1_ref, lw2_ref, lb2_ref,
                        out_ref, xp0_ref, xp1_ref, *, ksize, pad, slope):
    TB = x_ref.shape[1]

    def leaky(v):
        return jnp.maximum(v, slope * v)

    def conv_pool_leaky(xp_ref, x_val, w_ref, b_ref):
        # x_val: (L, TB, Cin) length-major activation (register value).
        # xp_ref: (L + 2*pad, TB, Cin) VMEM scratch for the zero-padded copy.
        L, _, cin = x_val.shape
        cout = w_ref.shape[2]
        lh = L // 2

        # Zero only the two pad slabs, then ONE batched store of the payload.
        if pad > 0:
            zpad = jnp.zeros((pad, TB, cin), jnp.float32)
            xp_ref[0:pad, :, :] = zpad
            xp_ref[L + pad:L + 2 * pad, :, :] = zpad
        xp_ref[pad:pad + L, :, :] = x_val

        w = w_ref[...]                                    # (K, Cin, Cout)
        acc = jnp.zeros((L * TB, cout), jnp.float32)
        for dk in range(ksize):                           # static unroll (K small)
            tap = xp_ref[dk:dk + L, :, :]                 # contiguous slab load
            tap2 = tap.reshape(L * TB, cin)               # sublane-aligned fold
            if cin == 1:
                acc = acc + tap2 * w[dk]                  # VPU broadcast-mul-add
            else:
                acc = acc + jnp.dot(tap2, w[dk],          # MXU, M = L*TB
                                    preferred_element_type=jnp.float32)
        acc = acc + b_ref[...]                            # (1, Cout) broadcast

        # MaxPool1d(2): rows are (l, b) ordered, so the pool pairs (2l', 2l'+1)
        # become adjacent TB-row halves after an aligned unfold; then LeakyReLU.
        y = acc.reshape(lh, 2 * TB, cout)
        pooled = jnp.maximum(y[:, 0:TB, :], y[:, TB:2 * TB, :])
        return leaky(pooled)                              # (L//2, TB, Cout)

    h1 = conv_pool_leaky(xp0_ref, x_ref[...], w0_ref, b0_ref)   # (L/2, TB, C1)
    h2 = conv_pool_leaky(xp1_ref, h1, w1_ref, b1_ref)           # (L/4, TB, C2)

    # Flatten + Linear0 fused: z[b,:] = sum_l h2[l,b,:] @ lw0[l].  lw0 is
    # pre-packed so the (l, c) order matches torch's NCL Flatten (c*L2 + l).
    lw0 = lw0_ref[...]                                    # (L2, C2, N1)
    z = jnp.zeros((TB, lw0.shape[2]), jnp.float32) + lb0_ref[...]
    for l in range(h2.shape[0]):
        z = z + jnp.dot(h2[l], lw0[l], preferred_element_type=jnp.float32)
    z = leaky(z)
    z = leaky(jnp.dot(z, lw1_ref[...], preferred_element_type=jnp.float32)
              + lb1_ref[...])
    out_ref[...] = (jnp.dot(z, lw2_ref[...], preferred_element_type=jnp.float32)
                    + lb2_ref[...]).astype(out_ref.dtype)


def conv_critic_forward(packed, x, *, kernel_size, padding, leaky_slope=0.2,
                        batch_tile=8):
    """Fused ConvCritic forward.  x: (B, len_sample) or (B, Cin, len_sample)."""
    if x.ndim == 2:                       # AddDimension() -> unsqueeze(1)
        x = x[:, None, :]
    bsz, cin, length = x.shape

    # Kernel assumes 'same' Conv1d output length (torch default here: K=5, p=2).
    assert kernel_size == 2 * padding + 1, "requires kernel_size == 2*padding + 1"
    assert length % 4 == 0, "len_sample must be divisible by 4 (two MaxPool1d(2))"
    assert batch_tile % 8 == 0 and bsz % batch_tile == 0, \
        "batch must be a multiple of batch_tile (multiple of 8)"
    assert packed["conv0_w"].shape[1] == cin
    c1 = packed["conv0_w"].shape[2]
    c2 = packed["conv1_w"].shape[2]
    assert packed["lin0_w"].shape[0] == length // 4
    assert packed["lin0_w"].shape[1] == c2
    n_out = packed["lin2_w"].shape[1]
    l1 = length // 2

    # Length-major input layout (L, B, Cin); one transpose in XLA glue.
    x_lm = jnp.transpose(x, (2, 0, 1)).astype(jnp.float32)

    args = (x_lm,
            packed["conv0_w"], packed["conv0_b"],
            packed["conv1_w"], packed["conv1_b"],
            packed["lin0_w"], packed["lin0_b"],
            packed["lin1_w"], packed["lin1_b"],
            packed["lin2_w"], packed["lin2_b"])

    def resident_spec(arr):               # full array, resident across the grid
        zeros = (0,) * arr.ndim
        return pl.BlockSpec(arr.shape, lambda i, _z=zeros: _z)

    in_specs = [pl.BlockSpec((length, batch_tile, cin), lambda i: (0, i, 0))]
    in_specs += [resident_spec(a) for a in args[1:]]
    out_specs = pl.BlockSpec((batch_tile, n_out), lambda i: (i, 0))

    kernel = functools.partial(_conv_critic_kernel, ksize=kernel_size,
                               pad=padding, slope=leaky_slope)
    return pl.pallas_call(
        kernel,
        out_shape=jax.ShapeDtypeStruct((bsz, n_out), jnp.float32),
        grid=(bsz // batch_tile,),
        in_specs=in_specs,
        out_specs=out_specs,
        scratch_shapes=[
            pltpu.VMEM((length + 2 * padding, batch_tile, cin), jnp.float32),
            pltpu.VMEM((l1 + 2 * padding, batch_tile, c1), jnp.float32),
        ],
        compiler_params=pltpu.CompilerParams(
            dimension_semantics=("parallel",)),
    )(*args)


# ----------------------------------------------------------------------------
# Glue: parameter init (torch layouts, spectral norm) + packing for the kernel
# ----------------------------------------------------------------------------
def spectral_normalize(w, key, n_iter=10, eps=1e-12):
    """torch.nn.utils.spectral_norm semantics on a conv weight (Cout,Cin,K)."""
    cout = w.shape[0]
    w_mat = w.reshape(cout, -1)
    u = jax.random.normal(key, (cout,), jnp.float32)
    u = u / (jnp.linalg.norm(u) + eps)
    v = None
    for _ in range(n_iter):
        v = w_mat.T @ u
        v = v / (jnp.linalg.norm(v) + eps)
        u = w_mat @ v
        u = u / (jnp.linalg.norm(u) + eps)
    sigma = jnp.dot(u, w_mat @ v)
    return w / sigma


def init_params(key, *, kernel_size, num_filters, num_neurons):
    """Parameters in torch layout: conv (Cout,Cin,K)/(Cout,), linear (Nout,Nin)/(Nout,)."""
    n_conv = len(num_filters) - 1
    n_lin = len(num_neurons) - 1
    keys = jax.random.split(key, 3 * n_conv + 2 * n_lin)
    tp = {}
    ki = 0
    for i in range(n_conv):
        cin, cout = num_filters[i], num_filters[i + 1]
        w = 0.2 * jax.random.normal(keys[ki], (cout, cin, kernel_size), jnp.float32)
        tp[f"conv{i}_w"] = spectral_normalize(w, keys[ki + 1], n_iter=10)
        tp[f"conv{i}_b"] = 0.1 * jax.random.normal(keys[ki + 2], (cout,), jnp.float32)
        ki += 3
    for i in range(n_lin):
        nin, nout = num_neurons[i], num_neurons[i + 1]
        tp[f"lin{i}_w"] = 0.2 * jax.random.normal(keys[ki], (nout, nin), jnp.float32)
        tp[f"lin{i}_b"] = 0.1 * jax.random.normal(keys[ki + 1], (nout,), jnp.float32)
        ki += 2
    return tp


def pack_params(tp):
    """Repack torch-layout params for the fused length-major kernel."""
    p = {}
    n_conv = sum(1 for k in tp if k.startswith("conv") and k.endswith("_w"))
    n_lin = sum(1 for k in tp if k.startswith("lin") and k.endswith("_w"))
    for i in range(n_conv):
        w = tp[f"conv{i}_w"]                               # (Cout, Cin, K)
        p[f"conv{i}_w"] = jnp.transpose(w, (2, 1, 0))      # (K, Cin, Cout)
        p[f"conv{i}_b"] = tp[f"conv{i}_b"].reshape(1, -1)
    # First linear: torch flatten index = c*L2 + l; kernel consumes the weight
    # as (L2, C2, N1) and does one (TB,C2)@(C2,N1) dot per length position l.
    c_last = tp[f"conv{n_conv - 1}_w"].shape[0]
    w0 = tp["lin0_w"]                                      # (N1, C2*L2)
    n1, n0 = w0.shape
    l_last = n0 // c_last
    p["lin0_w"] = jnp.transpose(w0.reshape(n1, c_last, l_last), (2, 1, 0))
    p["lin0_b"] = tp["lin0_b"].reshape(1, -1)
    for i in range(1, n_lin):
        p[f"lin{i}_w"] = tp[f"lin{i}_w"].T
        p[f"lin{i}_b"] = tp[f"lin{i}_b"].reshape(1, -1)
    return p


# ----------------------------------------------------------------------------
# Pure-JAX reference in exact torch layout/semantics (for correctness check)
# ----------------------------------------------------------------------------
def reference_forward(tparams, x, *, kernel_size, padding, leaky_slope=0.2):
    if x.ndim == 2:
        x = x[:, None, :]                                  # AddDimension
    n_conv = sum(1 for k in tparams if k.startswith("conv") and k.endswith("_w"))
    n_lin = sum(1 for k in tparams if k.startswith("lin") and k.endswith("_w"))
    h = x.astype(jnp.float32)                              # (B, Cin, L) NCL
    for i in range(n_conv):
        w = tparams[f"conv{i}_w"]                          # (Cout, Cin, K)
        b = tparams[f"conv{i}_b"]
        L = h.shape[-1]
        hp = jnp.pad(h, ((0, 0), (0, 0), (padding, padding)))
        y = sum(jnp.einsum("bcl,oc->bol", hp[:, :, dk:dk + L], w[:, :, dk])
                for dk in range(kernel_size)) + b[None, :, None]
        y = jnp.maximum(y[:, :, 0::2], y[:, :, 1::2])      # MaxPool1d(2)
        h = jnp.maximum(y, leaky_slope * y)                # LeakyReLU(0.2)
    z = h.reshape(h.shape[0], -1)                          # Flatten (NCL order)
    for i in range(n_lin):
        z = z @ tparams[f"lin{i}_w"].T + tparams[f"lin{i}_b"]
        if i < n_lin - 1:
            z = jnp.maximum(z, leaky_slope * z)            # leaky after all but last
    return z


# ----------------------------------------------------------------------------
if __name__ == "__main__":
    # Small, module-consistent hyperparameters (default topology: 2 convs, 3 linears).
    BATCH = 16
    BATCH_TILE = 8                      # 8 samples per grid step -> grid=(2,)
    KERNEL_SIZE, PADDING = 5, 2
    LEN_SAMPLE = 16
    IN_CHANNELS = 1
    NUM_FILTERS = [IN_CHANNELS, 8, 8]
    # Module invariant: first linear in-features == C_last * len_sample / (2*n_pools)
    NUM_NEURONS = [NUM_FILTERS[-1] * (LEN_SAMPLE // 4), 16, 8, 1]

    root = jax.random.PRNGKey(0)
    pkey, xkey = jax.random.split(root)
    torch_params = init_params(pkey, kernel_size=KERNEL_SIZE,
                               num_filters=NUM_FILTERS, num_neurons=NUM_NEURONS)
    packed = pack_params(torch_params)

    # 2-D input exercises the AddDimension() (unsqueeze(1)) path, Cin = 1.
    x = jax.random.normal(xkey, (BATCH, LEN_SAMPLE), jnp.float32)

    out = conv_critic_forward(packed, x, kernel_size=KERNEL_SIZE,
                              padding=PADDING, batch_tile=BATCH_TILE)
    out = jax.block_until_ready(out)

    ref = reference_forward(torch_params, x, kernel_size=KERNEL_SIZE,
                            padding=PADDING)

    assert out.shape == (BATCH, NUM_NEURONS[-1]), out.shape
    assert jnp.allclose(out, ref, atol=1e-4, rtol=1e-4), \
        float(jnp.max(jnp.abs(out - ref)))
    print("KERNEL_OK")
</pallas_src>

<mosaic_0001>
module attributes {stable_mosaic.version = 11 : i64} {
  func.func @_conv_critic_kernel(%arg0: i32, %arg1: memref<16x8x1xf32, #tpu.memory_space<vmem>>, %arg2: memref<5x1x8xf32, #tpu.memory_space<vmem>>, %arg3: memref<1x8xf32, #tpu.memory_space<vmem>>, %arg4: memref<5x8x8xf32, #tpu.memory_space<vmem>>, %arg5: memref<1x8xf32, #tpu.memory_space<vmem>>, %arg6: memref<4x8x16xf32, #tpu.memory_space<vmem>>, %arg7: memref<1x16xf32, #tpu.memory_space<vmem>>, %arg8: memref<16x8xf32, #tpu.memory_space<vmem>>, %arg9: memref<1x8xf32, #tpu.memory_space<vmem>>, %arg10: memref<8x1xf32, #tpu.memory_space<vmem>>, %arg11: memref<1x1xf32, #tpu.memory_space<vmem>>, %arg12: memref<8x1xf32, #tpu.memory_space<vmem>>, %arg13: memref<20x8x1xf32, #tpu.memory_space<vmem>>, %arg14: memref<12x8x8xf32, #tpu.memory_space<vmem>>) attributes {dimension_semantics = [#tpu.dimension_semantics<parallel>], iteration_bounds = array<i64: 2>, scalar_prefetch = 0 : i64, scratch_operands = 2 : i64, tpu.core_type = #tpu.core_type<tc>, window_params = [{transform_indices = @transform_0, window_bounds = array<i64: 16, 8, 1>}, {pipeline_mode = #tpu.pipeline_mode<synchronous>, transform_indices = @transform_1, window_bounds = array<i64: 5, 1, 8>}, {pipeline_mode = #tpu.pipeline_mode<synchronous>, transform_indices = @transform_2, window_bounds = array<i64: 1, 8>}, {pipeline_mode = #tpu.pipeline_mode<synchronous>, transform_indices = @transform_3, window_bounds = array<i64: 5, 8, 8>}, {pipeline_mode = #tpu.pipeline_mode<synchronous>, transform_indices = @transform_4, window_bounds = array<i64: 1, 8>}, {pipeline_mode = #tpu.pipeline_mode<synchronous>, transform_indices = @transform_5, window_bounds = array<i64: 4, 8, 16>}, {pipeline_mode = #tpu.pipeline_mode<synchronous>, transform_indices = @transform_6, window_bounds = array<i64: 1, 16>}, {pipeline_mode = #tpu.pipeline_mode<synchronous>, transform_indices = @transform_7, window_bounds = array<i64: 16, 8>}, {pipeline_mode = #tpu.pipeline_mode<synchronous>, transform_indices = @transform_8, window_bounds = array<i64: 1, 8>}, {pipeline_mode = #tpu.pipeline_mode<synchronous>, transform_indices = @transform_9, window_bounds = array<i64: 8, 1>}, {pipeline_mode = #tpu.pipeline_mode<synchronous>, transform_indices = @transform_10, window_bounds = array<i64: 1, 1>}, {transform_indices = @transform_11, window_bounds = array<i64: 8, 1>}]} {
    %c0 = arith.constant 0 : index
    %c0_0 = arith.constant 0 : index
    %c0_1 = arith.constant 0 : index
    %0 = vector.load %arg1[%c0, %c0_0, %c0_1] : memref<16x8x1xf32, #tpu.memory_space<vmem>>, vector<16x8x1xf32>
    %cst = arith.constant 0.000000e+00 : f32
    %1 = vector.broadcast %cst : f32 to vector<2x8x1xf32>
    %c0_2 = arith.constant 0 : index
    %c0_3 = arith.constant 0 : index
    %c0_4 = arith.constant 0 : index
    %2 = vector.load %arg13[%c0_2, %c0_3, %c0_4] : memref<20x8x1xf32, #tpu.memory_space<vmem>>, vector<2x8x1xf32>
    tpu.vector_store %arg13[%c0_2, %c0_3, %c0_4], %1 {strides = array<i32>} : memref<20x8x1xf32, #tpu.memory_space<vmem>>, vector<2x8x1xf32>,
    %c18 = arith.constant 18 : index
    %c0_5 = arith.constant 0 : index
    %c0_6 = arith.constant 0 : index
    %3 = vector.load %arg13[%c18, %c0_5, %c0_6] : memref<20x8x1xf32, #tpu.memory_space<vmem>>, vector<2x8x1xf32>
    tpu.vector_store %arg13[%c18, %c0_5, %c0_6], %1 {strides = array<i32>} : memref<20x8x1xf32, #tpu.memory_space<vmem>>, vector<2x8x1xf32>,
    %c2 = arith.constant 2 : index
    %c0_7 = arith.constant 0 : index
    %c0_8 = arith.constant 0 : index
    %4 = vector.load %arg13[%c2, %c0_7, %c0_8] : memref<20x8x1xf32, #tpu.memory_space<vmem>>, vector<16x8x1xf32>
    tpu.vector_store %arg13[%c2, %c0_7, %c0_8], %0 {strides = array<i32>} : memref<20x8x1xf32, #tpu.memory_space<vmem>>, vector<16x8x1xf32>,
    %c0_9 = arith.constant 0 : index
    %c0_10 = arith.constant 0 : index
    %c0_11 = arith.constant 0 : index
    %5 = vector.load %arg2[%c0_9, %c0_10, %c0_11] : memref<5x1x8xf32, #tpu.memory_space<vmem>>, vector<5x1x8xf32>
    %cst_12 = arith.constant 0.000000e+00 : f32
    %6 = vector.broadcast %cst_12 : f32 to vector<128x8xf32>
    %c0_13 = arith.constant 0 : index
    %c0_14 = arith.constant 0 : index
    %c0_15 = arith.constant 0 : index
    %7 = vector.load %arg13[%c0_13, %c0_14, %c0_15] : memref<20x8x1xf32, #tpu.memory_space<vmem>>, vector<16x8x1xf32>
    %8 = vector.shape_cast %7 : vector<16x8x1xf32> to vector<128x1xf32>
    %9 = vector.extract_strided_slice %5 {offsets = [0, 0, 0], sizes = [1, 1, 8], strides = [1, 1, 1]} : vector<5x1x8xf32> to vector<1x1x8xf32>
    %10 = vector.shape_cast %9 : vector<1x1x8xf32> to vector<1x8xf32>
    %11 = vector.broadcast %8 : vector<128x1xf32> to vector<128x8xf32>
    %12 = vector.broadcast %10 : vector<1x8xf32> to vector<128x8xf32>
    %13 = arith.mulf %11, %12 : vector<128x8xf32>
    %14 = arith.addf %6, %13 : vector<128x8xf32>
    %c1 = arith.constant 1 : index
    %c0_16 = arith.constant 0 : index
    %c0_17 = arith.constant 0 : index
    %15 = vector.load %arg13[%c1, %c0_16, %c0_17] : memref<20x8x1xf32, #tpu.memory_space<vmem>>, vector<16x8x1xf32>
    %16 = vector.shape_cast %15 : vector<16x8x1xf32> to vector<128x1xf32>
    %17 = vector.extract_strided_slice %5 {offsets = [1, 0, 0], sizes = [1, 1, 8], strides = [1, 1, 1]} : vector<5x1x8xf32> to vector<1x1x8xf32>
    %18 = vector.shape_cast %17 : vector<1x1x8xf32> to vector<1x8xf32>
    %19 = vector.broadcast %16 : vector<128x1xf32> to vector<128x8xf32>
    %20 = vector.broadcast %18 : vector<1x8xf32> to vector<128x8xf32>
    %21 = arith.mulf %19, %20 : vector<128x8xf32>
    %22 = arith.addf %14, %21 : vector<128x8xf32>
    %c2_18 = arith.constant 2 : index
    %c0_19 = arith.constant 0 : index
    %c0_20 = arith.constant 0 : index
    %23 = vector.load %arg13[%c2_18, %c0_19, %c0_20] : memref<20x8x1xf32, #tpu.memory_space<vmem>>, vector<16x8x1xf32>
    %24 = vector.shape_cast %23 : vector<16x8x1xf32> to vector<128x1xf32>
    %25 = vector.extract_strided_slice %5 {offsets = [2, 0, 0], sizes = [1, 1, 8], strides = [1, 1, 1]} : vector<5x1x8xf32> to vector<1x1x8xf32>
    %26 = vector.shape_cast %25 : vector<1x1x8xf32> to vector<1x8xf32>
    %27 = vector.broadcast %24 : vector<128x1xf32> to vector<128x8xf32>
    %28 = vector.broadcast %26 : vector<1x8xf32> to vector<128x8xf32>
    %29 = arith.mulf %27, %28 : vector<128x8xf32>
    %30 = arith.addf %22, %29 : vector<128x8xf32>
    %c3 = arith.constant 3 : index
    %c0_21 = arith.constant 0 : index
    %c0_22 = arith.constant 0 : index
    %31 = vector.load %arg13[%c3, %c0_21, %c0_22] : memref<20x8x1xf32, #tpu.memory_space<vmem>>, vector<16x8x1xf32>
    %32 = vector.shape_cast %31 : vector<16x8x1xf32> to vector<128x1xf32>
    %33 = vector.extract_strided_slice %5 {offsets = [3, 0, 0], sizes = [1, 1, 8], strides = [1, 1, 1]} : vector<5x1x8xf32> to vector<1x1x8xf32>
    %34 = vector.shape_cast %33 : vector<1x1x8xf32> to vector<1x8xf32>
    %35 = vector.broadcast %32 : vector<128x1xf32> to vector<128x8xf32>
    %36 = vector.broadcast %34 : vector<1x8xf32> to vector<128x8xf32>
    %37 = arith.mulf %35, %36 : vector<128x8xf32>
    %38 = arith.addf %30, %37 : vector<128x8xf32>
    %c4 = arith.constant 4 : index
    %c0_23 = arith.constant 0 : index
    %c0_24 = arith.constant 0 : index
    %39 = vector.load %arg13[%c4, %c0_23, %c0_24] : memref<20x8x1xf32, #tpu.memory_space<vmem>>, vector<16x8x1xf32>
    %40 = vector.shape_cast %39 : vector<16x8x1xf32> to vector<128x1xf32>
    %41 = vector.extract_strided_slice %5 {offsets = [4, 0, 0], sizes = [1, 1, 8], strides = [1, 1, 1]} : vector<5x1x8xf32> to vector<1x1x8xf32>
    %42 = vector.shape_cast %41 : vector<1x1x8xf32> to vector<1x8xf32>
    %43 = vector.broadcast %40 : vector<128x1xf32> to vector<128x8xf32>
    %44 = vector.broadcast %42 : vector<1x8xf32> to vector<128x8xf32>
    %45 = arith.mulf %43, %44 : vector<128x8xf32>
    %46 = arith.addf %38, %45 : vector<128x8xf32>
    %c0_25 = arith.constant 0 : index
    %c0_26 = arith.constant 0 : index
    %47 = vector.load %arg3[%c0_25, %c0_26] : memref<1x8xf32, #tpu.memory_space<vmem>>, vector<1x8xf32>
    %48 = vector.broadcast %47 : vector<1x8xf32> to vector<128x8xf32>
    %49 = arith.addf %46, %48 : vector<128x8xf32>
    %50 = vector.shape_cast %49 : vector<128x8xf32> to vector<8x16x8xf32>
    %51 = vector.extract_strided_slice %50 {offsets = [0, 0, 0], sizes = [8, 8, 8], strides = [1, 1, 1]} : vector<8x16x8xf32> to vector<8x8x8xf32>
    %52 = vector.extract_strided_slice %50 {offsets = [0, 8, 0], sizes = [8, 8, 8], strides = [1, 1, 1]} : vector<8x16x8xf32> to vector<8x8x8xf32>
    %53 = arith.maximumf %51, %52 : vector<8x8x8xf32>
    %cst_27 = arith.constant 2.000000e-01 : f32
    %54 = vector.broadcast %cst_27 : f32 to vector<8x8x8xf32>
    %55 = arith.mulf %54, %53 : vector<8x8x8xf32>
    %56 = arith.maximumf %53, %55 : vector<8x8x8xf32>
    %cst_28 = arith.constant 0.000000e+00 : f32
    %57 = vector.broadcast %cst_28 : f32 to vector<2x8x8xf32>
    %c0_29 = arith.constant 0 : index
    %c0_30 = arith.constant 0 : index
    %c0_31 = arith.constant 0 : index
    %58 = vector.load %arg14[%c0_29, %c0_30, %c0_31] : memref<12x8x8xf32, #tpu.memory_space<vmem>>, vector<2x8x8xf32>
    tpu.vector_store %arg14[%c0_29, %c0_30, %c0_31], %57 {strides = array<i32>} : memref<12x8x8xf32, #tpu.memory_space<vmem>>, vector<2x8x8xf32>,
    %c10 = arith.constant 10 : index
    %c0_32 = arith.constant 0 : index
    %c0_33 = arith.constant 0 : index
    %59 = vector.load %arg14[%c10, %c0_32, %c0_33] : memref<12x8x8xf32, #tpu.memory_space<vmem>>, vector<2x8x8xf32>
    tpu.vector_store %arg14[%c10, %c0_32, %c0_33], %57 {strides = array<i32>} : memref<12x8x8xf32, #tpu.memory_space<vmem>>, vector<2x8x8xf32>,
    %c2_34 = arith.constant 2 : index
    %c0_35 = arith.constant 0 : index
    %c0_36 = arith.constant 0 : index
    %60 = vector.load %arg14[%c2_34, %c0_35, %c0_36] : memref<12x8x8xf32, #tpu.memory_space<vmem>>, vector<8x8x8xf32>
    tpu.vector_store %arg14[%c2_34, %c0_35, %c0_36], %56 {strides = array<i32>} : memref<12x8x8xf32, #tpu.memory_space<vmem>>, vector<8x8x8xf32>,
    %c0_37 = arith.constant 0 : index
    %c0_38 = arith.constant 0 : index
    %c0_39 = arith.constant 0 : index
    %61 = vector.load %arg4[%c0_37, %c0_38, %c0_39] : memref<5x8x8xf32, #tpu.memory_space<vmem>>, vector<5x8x8xf32>
    %cst_40 = arith.constant 0.000000e+00 : f32
    %62 = vector.broadcast %cst_40 : f32 to vector<64x8xf32>
    %c0_41 = arith.constant 0 : index
    %c0_42 = arith.constant 0 : index
    %c0_43 = arith.constant 0 : index
    %63 = vector.load %arg14[%c0_41, %c0_42, %c0_43] : memref<12x8x8xf32, #tpu.memory_space<vmem>>, vector<8x8x8xf32>
    %64 = vector.shape_cast %63 : vector<8x8x8xf32> to vector<64x8xf32>
    %65 = vector.extract_strided_slice %61 {offsets = [0, 0, 0], sizes = [1, 8, 8], strides = [1, 1, 1]} : vector<5x8x8xf32> to vector<1x8x8xf32>
    %66 = vector.shape_cast %65 : vector<1x8x8xf32> to vector<8x8xf32>
    %cst_44 = arith.constant dense<0.000000e+00> : vector<64x8xf32>
    %67 = tpu.matmul %64, %66, %cst_44 {dimension_numbers = #tpu.dot_dimension_numbers<[1], [0], [0], [1], [0, 0, 1, 1], [], []>} : vector<64x8xf32>, vector<8x8xf32>, vector<64x8xf32> -> vector<64x8xf32>
    %68 = arith.addf %62, %67 : vector<64x8xf32>
    %c1_45 = arith.constant 1 : index
    %c0_46 = arith.constant 0 : index
    %c0_47 = arith.constant 0 : index
    %69 = vector.load %arg14[%c1_45, %c0_46, %c0_47] : memref<12x8x8xf32, #tpu.memory_space<vmem>>, vector<8x8x8xf32>
    %70 = vector.shape_cast %69 : vector<8x8x8xf32> to vector<64x8xf32>
    %71 = vector.extract_strided_slice %61 {offsets = [1, 0, 0], sizes = [1, 8, 8], strides = [1, 1, 1]} : vector<5x8x8xf32> to vector<1x8x8xf32>
    %72 = vector.shape_cast %71 : vector<1x8x8xf32> to vector<8x8xf32>
    %cst_48 = arith.constant dense<0.000000e+00> : vector<64x8xf32>
    %73 = tpu.matmul %70, %72, %cst_48 {dimension_numbers = #tpu.dot_dimension_numbers<[1], [0], [0], [1], [0, 0, 1, 1], [], []>} : vector<64x8xf32>, vector<8x8xf32>, vector<64x8xf32> -> vector<64x8xf32>
    %74 = arith.addf %68, %73 : vector<64x8xf32>
    %c2_49 = arith.constant 2 : index
    %c0_50 = arith.constant 0 : index
    %c0_51 = arith.constant 0 : index
    %75 = vector.load %arg14[%c2_49, %c0_50, %c0_51] : memref<12x8x8xf32, #tpu.memory_space<vmem>>, vector<8x8x8xf32>
    %76 = vector.shape_cast %75 : vector<8x8x8xf32> to vector<64x8xf32>
    %77 = vector.extract_strided_slice %61 {offsets = [2, 0, 0], sizes = [1, 8, 8], strides = [1, 1, 1]} : vector<5x8x8xf32> to vector<1x8x8xf32>
    %78 = vector.shape_cast %77 : vector<1x8x8xf32> to vector<8x8xf32>
    %cst_52 = arith.constant dense<0.000000e+00> : vector<64x8xf32>
    %79 = tpu.matmul %76, %78, %cst_52 {dimension_numbers = #tpu.dot_dimension_numbers<[1], [0], [0], [1], [0, 0, 1, 1], [], []>} : vector<64x8xf32>, vector<8x8xf32>, vector<64x8xf32> -> vector<64x8xf32>
    %80 = arith.addf %74, %79 : vector<64x8xf32>
    %c3_53 = arith.constant 3 : index
    %c0_54 = arith.constant 0 : index
    %c0_55 = arith.constant 0 : index
    %81 = vector.load %arg14[%c3_53, %c0_54, %c0_55] : memref<12x8x8xf32, #tpu.memory_space<vmem>>, vector<8x8x8xf32>
    %82 = vector.shape_cast %81 : vector<8x8x8xf32> to vector<64x8xf32>
    %83 = vector.extract_strided_slice %61 {offsets = [3, 0, 0], sizes = [1, 8, 8], strides = [1, 1, 1]} : vector<5x8x8xf32> to vector<1x8x8xf32>
    %84 = vector.shape_cast %83 : vector<1x8x8xf32> to vector<8x8xf32>
    %cst_56 = arith.constant dense<0.000000e+00> : vector<64x8xf32>
    %85 = tpu.matmul %82, %84, %cst_56 {dimension_numbers = #tpu.dot_dimension_numbers<[1], [0], [0], [1], [0, 0, 1, 1], [], []>} : vector<64x8xf32>, vector<8x8xf32>, vector<64x8xf32> -> vector<64x8xf32>
    %86 = arith.addf %80, %85 : vector<64x8xf32>
    %c4_57 = arith.constant 4 : index
    %c0_58 = arith.constant 0 : index
    %c0_59 = arith.constant 0 : index
    %87 = vector.load %arg14[%c4_57, %c0_58, %c0_59] : memref<12x8x8xf32, #tpu.memory_space<vmem>>, vector<8x8x8xf32>
    %88 = vector.shape_cast %87 : vector<8x8x8xf32> to vector<64x8xf32>
    %89 = vector.extract_strided_slice %61 {offsets = [4, 0, 0], sizes = [1, 8, 8], strides = [1, 1, 1]} : vector<5x8x8xf32> to vector<1x8x8xf32>
    %90 = vector.shape_cast %89 : vector<1x8x8xf32> to vector<8x8xf32>
    %cst_60 = arith.constant dense<0.000000e+00> : vector<64x8xf32>
    %91 = tpu.matmul %88, %90, %cst_60 {dimension_numbers = #tpu.dot_dimension_numbers<[1], [0], [0], [1], [0, 0, 1, 1], [], []>} : vector<64x8xf32>, vector<8x8xf32>, vector<64x8xf32> -> vector<64x8xf32>
    %92 = arith.addf %86, %91 : vector<64x8xf32>
    %c0_61 = arith.constant 0 : index
    %c0_62 = arith.constant 0 : index
    %93 = vector.load %arg5[%c0_61, %c0_62] : memref<1x8xf32, #tpu.memory_space<vmem>>, vector<1x8xf32>
    %94 = vector.broadcast %93 : vector<1x8xf32> to vector<64x8xf32>
    %95 = arith.addf %92, %94 : vector<64x8xf32>
    %96 = vector.shape_cast %95 : vector<64x8xf32> to vector<4x16x8xf32>
    %97 = vector.extract_strided_slice %96 {offsets = [0, 0, 0], sizes = [4, 8, 8], strides = [1, 1, 1]} : vector<4x16x8xf32> to vector<4x8x8xf32>
    %98 = vector.extract_strided_slice %96 {offsets = [0, 8, 0], sizes = [4, 8, 8], strides = [1, 1, 1]} : vector<4x16x8xf32> to vector<4x8x8xf32>
    %99 = arith.maximumf %97, %98 : vector<4x8x8xf32>
    %cst_63 = arith.constant 2.000000e-01 : f32
    %100 = vector.broadcast %cst_63 : f32 to vector<4x8x8xf32>
    %101 = arith.mulf %100, %99 : vector<4x8x8xf32>
    %102 = arith.maximumf %99, %101 : vector<4x8x8xf32>
    %c0_64 = arith.constant 0 : index
    %c0_65 = arith.constant 0 : index
    %c0_66 = arith.constant 0 : index
    %103 = vector.load %arg6[%c0_64, %c0_65, %c0_66] : memref<4x8x16xf32, #tpu.memory_space<vmem>>, vector<4x8x16xf32>
    %cst_67 = arith.constant 0.000000e+00 : f32
    %104 = vector.broadcast %cst_67 : f32 to vector<8x16xf32>
    %c0_68 = arith.constant 0 : index
    %c0_69 = arith.constant 0 : index
    %105 = vector.load %arg7[%c0_68, %c0_69] : memref<1x16xf32, #tpu.memory_space<vmem>>, vector<1x16xf32>
    %106 = vector.broadcast %105 : vector<1x16xf32> to vector<8x16xf32>
    %107 = arith.addf %104, %106 : vector<8x16xf32>
    %108 = vector.extract_strided_slice %102 {offsets = [0, 0, 0], sizes = [1, 8, 8], strides = [1, 1, 1]} : vector<4x8x8xf32> to vector<1x8x8xf32>
    %109 = vector.shape_cast %108 : vector<1x8x8xf32> to vector<8x8xf32>
    %110 = vector.extract_strided_slice %103 {offsets = [0, 0, 0], sizes = [1, 8, 16], strides = [1, 1, 1]} : vector<4x8x16xf32> to vector<1x8x16xf32>
    %111 = vector.shape_cast %110 : vector<1x8x16xf32> to vector<8x16xf32>
    %cst_70 = arith.constant dense<0.000000e+00> : vector<8x16xf32>
    %112 = tpu.matmul %109, %111, %cst_70 {dimension_numbers = #tpu.dot_dimension_numbers<[1], [0], [0], [1], [0, 0, 1, 1], [], []>} : vector<8x8xf32>, vector<8x16xf32>, vector<8x16xf32> -> vector<8x16xf32>
    %113 = arith.addf %107, %112 : vector<8x16xf32>
    %114 = vector.extract_strided_slice %102 {offsets = [1, 0, 0], sizes = [1, 8, 8], strides = [1, 1, 1]} : vector<4x8x8xf32> to vector<1x8x8xf32>
    %115 = vector.shape_cast %114 : vector<1x8x8xf32> to vector<8x8xf32>
    %116 = vector.extract_strided_slice %103 {offsets = [1, 0, 0], sizes = [1, 8, 16], strides = [1, 1, 1]} : vector<4x8x16xf32> to vector<1x8x16xf32>
    %117 = vector.shape_cast %116 : vector<1x8x16xf32> to vector<8x16xf32>
    %cst_71 = arith.constant dense<0.000000e+00> : vector<8x16xf32>
    %118 = tpu.matmul %115, %117, %cst_71 {dimension_numbers = #tpu.dot_dimension_numbers<[1], [0], [0], [1], [0, 0, 1, 1], [], []>} : vector<8x8xf32>, vector<8x16xf32>, vector<8x16xf32> -> vector<8x16xf32>
    %119 = arith.addf %113, %118 : vector<8x16xf32>
    %120 = vector.extract_strided_slice %102 {offsets = [2, 0, 0], sizes = [1, 8, 8], strides = [1, 1, 1]} : vector<4x8x8xf32> to vector<1x8x8xf32>
    %121 = vector.shape_cast %120 : vector<1x8x8xf32> to vector<8x8xf32>
    %122 = vector.extract_strided_slice %103 {offsets = [2, 0, 0], sizes = [1, 8, 16], strides = [1, 1, 1]} : vector<4x8x16xf32> to vector<1x8x16xf32>
    %123 = vector.shape_cast %122 : vector<1x8x16xf32> to vector<8x16xf32>
    %cst_72 = arith.constant dense<0.000000e+00> : vector<8x16xf32>
    %124 = tpu.matmul %121, %123, %cst_72 {dimension_numbers = #tpu.dot_dimension_numbers<[1], [0], [0], [1], [0, 0, 1, 1], [], []>} : vector<8x8xf32>, vector<8x16xf32>, vector<8x16xf32> -> vector<8x16xf32>
    %125 = arith.addf %119, %124 : vector<8x16xf32>
    %126 = vector.extract_strided_slice %102 {offsets = [3, 0, 0], sizes = [1, 8, 8], strides = [1, 1, 1]} : vector<4x8x8xf32> to vector<1x8x8xf32>
    %127 = vector.shape_cast %126 : vector<1x8x8xf32> to vector<8x8xf32>
    %128 = vector.extract_strided_slice %103 {offsets = [3, 0, 0], sizes = [1, 8, 16], strides = [1, 1, 1]} : vector<4x8x16xf32> to vector<1x8x16xf32>
    %129 = vector.shape_cast %128 : vector<1x8x16xf32> to vector<8x16xf32>
    %cst_73 = arith.constant dense<0.000000e+00> : vector<8x16xf32>
    %130 = tpu.matmul %127, %129, %cst_73 {dimension_numbers = #tpu.dot_dimension_numbers<[1], [0], [0], [1], [0, 0, 1, 1], [], []>} : vector<8x8xf32>, vector<8x16xf32>, vector<8x16xf32> -> vector<8x16xf32>
    %131 = arith.addf %125, %130 : vector<8x16xf32>
    %cst_74 = arith.constant 2.000000e-01 : f32
    %132 = vector.broadcast %cst_74 : f32 to vector<8x16xf32>
    %133 = arith.mulf %132, %131 : vector<8x16xf32>
    %134 = arith.maximumf %131, %133 : vector<8x16xf32>
    %c0_75 = arith.constant 0 : index
    %c0_76 = arith.constant 0 : index
    %135 = vector.load %arg8[%c0_75, %c0_76] : memref<16x8xf32, #tpu.memory_space<vmem>>, vector<16x8xf32>
    %cst_77 = arith.constant dense<0.000000e+00> : vector<8x8xf32>
    %136 = tpu.matmul %134, %135, %cst_77 {dimension_numbers = #tpu.dot_dimension_numbers<[1], [0], [0], [1], [0, 0, 1, 1], [], []>} : vector<8x16xf32>, vector<16x8xf32>, vector<8x8xf32> -> vector<8x8xf32>
    %c0_78 = arith.constant 0 : index
    %c0_79 = arith.constant 0 : index
    %137 = vector.load %arg9[%c0_78, %c0_79] : memref<1x8xf32, #tpu.memory_space<vmem>>, vector<1x8xf32>
    %138 = vector.broadcast %137 : vector<1x8xf32> to vector<8x8xf32>
    %139 = arith.addf %136, %138 : vector<8x8xf32>
    %cst_80 = arith.constant 2.000000e-01 : f32
    %140 = vector.broadcast %cst_80 : f32 to vector<8x8xf32>
    %141 = arith.mulf %140, %139 : vector<8x8xf32>
    %142 = arith.maximumf %139, %141 : vector<8x8xf32>
    %c0_81 = arith.constant 0 : index
    %c0_82 = arith.constant 0 : index
    %143 = vector.load %arg10[%c0_81, %c0_82] : memref<8x1xf32, #tpu.memory_space<vmem>>, vector<8x1xf32>
    %cst_83 = arith.constant dense<0.000000e+00> : vector<8x1xf32>
    %144 = tpu.matmul %142, %143, %cst_83 {dimension_numbers = #tpu.dot_dimension_numbers<[1], [0], [0], [1], [0, 0, 1, 1], [], []>} : vector<8x8xf32>, vector<8x1xf32>, vector<8x1xf32> -> vector<8x1xf32>
    %c0_84 = arith.constant 0 : index
    %c0_85 = arith.constant 0 : index
    %145 = vector.load %arg11[%c0_84, %c0_85] : memref<1x1xf32, #tpu.memory_space<vmem>>, vector<1x1xf32>
    %146 = vector.broadcast %145 : vector<1x1xf32> to vector<8x1xf32>
    %147 = arith.addf %144, %146 : vector<8x1xf32>
    %c0_86 = arith.constant 0 : index
    %c0_87 = arith.constant 0 : index
    %148 = vector.load %arg12[%c0_86, %c0_87] : memref<8x1xf32, #tpu.memory_space<vmem>>, vector<8x1xf32>
    tpu.vector_store %arg12[%c0_86, %c0_87], %147 {strides = array<i32>} : memref<8x1xf32, #tpu.memory_space<vmem>>, vector<8x1xf32>,
    return
  }
  func.func @transform_0(%arg0: i32) -> (i32, i32, i32) {
    %c0_i32 = arith.constant 0 : i32
    %c0_i32_0 = arith.constant 0 : i32
    %c0_i32_1 = arith.constant 0 : i32
    return %c0_i32, %arg0, %c0_i32_0 : i32, i32, i32
  }
  func.func @transform_1(%arg0: i32) -> (i32, i32, i32) {
    %c0_i32 = arith.constant 0 : i32
    %c0_i32_0 = arith.constant 0 : i32
    %c0_i32_1 = arith.constant 0 : i32
    %c0_i32_2 = arith.constant 0 : i32
    return %c0_i32, %c0_i32_0, %c0_i32_1 : i32, i32, i32
  }
  func.func @transform_2(%arg0: i32) -> (i32, i32) {
    %c0_i32 = arith.constant 0 : i32
    %c0_i32_0 = arith.constant 0 : i32
    %c0_i32_1 = arith.constant 0 : i32
    return %c0_i32, %c0_i32_0 : i32, i32
  }
  func.func @transform_3(%arg0: i32) -> (i32, i32, i32) {
    %c0_i32 = arith.constant 0 : i32
    %c0_i32_0 = arith.constant 0 : i32
    %c0_i32_1 = arith.constant 0 : i32
    %c0_i32_2 = arith.constant 0 : i32
    return %c0_i32, %c0_i32_0, %c0_i32_1 : i32, i32, i32
  }
  func.func @transform_4(%arg0: i32) -> (i32, i32) {
    %c0_i32 = arith.constant 0 : i32
    %c0_i32_0 = arith.constant 0 : i32
    %c0_i32_1 = arith.constant 0 : i32
    return %c0_i32, %c0_i32_0 : i32, i32
  }
  func.func @transform_5(%arg0: i32) -> (i32, i32, i32) {
    %c0_i32 = arith.constant 0 : i32
    %c0_i32_0 = arith.constant 0 : i32
    %c0_i32_1 = arith.constant 0 : i32
    %c0_i32_2 = arith.constant 0 : i32
    return %c0_i32, %c0_i32_0, %c0_i32_1 : i32, i32, i32
  }
  func.func @transform_6(%arg0: i32) -> (i32, i32) {
    %c0_i32 = arith.constant 0 : i32
    %c0_i32_0 = arith.constant 0 : i32
    %c0_i32_1 = arith.constant 0 : i32
    return %c0_i32, %c0_i32_0 : i32, i32
  }
  func.func @transform_7(%arg0: i32) -> (i32, i32) {
    %c0_i32 = arith.constant 0 : i32
    %c0_i32_0 = arith.constant 0 : i32
    %c0_i32_1 = arith.constant 0 : i32
    return %c0_i32, %c0_i32_0 : i32, i32
  }
  func.func @transform_8(%arg0: i32) -> (i32, i32) {
    %c0_i32 = arith.constant 0 : i32
    %c0_i32_0 = arith.constant 0 : i32
    %c0_i32_1 = arith.constant 0 : i32
    return %c0_i32, %c0_i32_0 : i32, i32
  }
  func.func @transform_9(%arg0: i32) -> (i32, i32) {
    %c0_i32 = arith.constant 0 : i32
    %c0_i32_0 = arith.constant 0 : i32
    %c0_i32_1 = arith.constant 0 : i32
    return %c0_i32, %c0_i32_0 : i32, i32
  }
  func.func @transform_10(%arg0: i32) -> (i32, i32) {
    %c0_i32 = arith.constant 0 : i32
    %c0_i32_0 = arith.constant 0 : i32
    %c0_i32_1 = arith.constant 0 : i32
    return %c0_i32, %c0_i32_0 : i32, i32
  }
  func.func @transform_11(%arg0: i32) -> (i32, i32) {
    %c0_i32 = arith.constant 0 : i32
    %c0_i32_0 = arith.constant 0 : i32
    return %arg0, %c0_i32 : i32, i32
  }
}

</mosaic_0001>

<llo_original>
// kernel: tpu_custom_call.1
$region0: #{tpu_custom_call.1}
  #allocation0 [shape = 'u32[]', space=smem, size = 0x4, offset = 0x4, fixed_abs, tag = 'smem constant byte address 0x4 - core index']
  #allocation1 [shape = 'u32[144,128]{1,0:T(1,128)}', space=vmem, size = 0x12000, scoped, tag = 'internal scratch']
  #allocation2 [shape = 'f32[20,8,1]{2,1,0:T(8,128)}', space=vmem, size = 0x14000, scoped, tag = 'scratch operand']
  #allocation3 [shape = 'f32[12,8,8]{2,1,0:T(8,128)}', space=vmem, size = 0xc000, scoped, tag = 'scratch operand']
  #allocation4 [shape = 'f32[1,1]{1,0:T(1,128)S(1)}', space=vmem, size = 0x200, scoped, tag = 'scoped memory for tpu_custom_call.1']
  %s0 = inlined_call_operand.vmem [shape: f32[16,16,1], index: 0, kind: input, shape index: {}]
  %s1 = inlined_call_operand.vmem [shape: f32[5,1,8], index: 1, kind: input, shape index: {}]
  %s2 = inlined_call_operand.vmem [shape: f32[1,8], index: 2, kind: input, shape index: {}]
  %s3 = inlined_call_operand.vmem [shape: f32[5,8,8], index: 3, kind: input, shape index: {}]
  %s4 = inlined_call_operand.vmem [shape: f32[1,8], index: 4, kind: input, shape index: {}]
  %s5 = inlined_call_operand.vmem [shape: f32[4,8,16], index: 5, kind: input, shape index: {}]
  %s6 = inlined_call_operand.vmem [shape: f32[1,16], index: 6, kind: input, shape index: {}]
  %s7 = inlined_call_operand.vmem [shape: f32[16,8], index: 7, kind: input, shape index: {}]
  %s8 = inlined_call_operand.vmem [shape: f32[1,8], index: 8, kind: input, shape index: {}]
  %s9 = inlined_call_operand.vmem [shape: f32[8,1], index: 9, kind: input, shape index: {}]
  %s10 = inlined_call_operand.<no memory space> [shape: f32[1,1], index: 10, kind: input, shape index: {}]
  %s11 = inlined_call_operand.vmem [shape: f32[16,1], index: 11, kind: output, shape index: {}]
  %s12 = sld [smem:[#allocation0]]
  $region115: #{tpu_custom_call.1} parent=0
    _
  %s14 = ssub.s32 1, %s12
  %s15 = scalar_select 0, %s14, %s12
  %v16 = vstv %s10
  %17 = vst [vmem:[#allocation4] sm:$0x1] %v16
  $region1: #{tpu_custom_call.1} parent=0
    #allocation5 [shape = 'u8[131072]{0}', space=vmem, size = 0x20000, scoped, tag = 'input window, operand 0']
    loop: start=0, step=1, limit=4
    $region2: #{tpu_custom_call.1} parent=1 // loop_pre_header
      _
    $region3: #{tpu_custom_call.1} parent=1 // loop_header
      %s19 = sphi 0, %s23
      %p20 = scmp.ge.s32.totalorder %s19, 4
      %s29 = sphi 0, %s31
      %s32 = sphi 0, %s29
      %s33 = sphi 0, %s32
      %s49 = sphi 0, %s33
      %s53 = sphi 0, %s53
      %s55 = sphi 0, %s53
      %s56 = sphi 0, %s55
      %s70 = sphi 0, %s56
      %s74 = sphi 0, %s74
      %s76 = sphi 0, %s74
      %s77 = sphi 0, %s76
      %s91 = sphi 0, %s77
      %s95 = sphi 0, %s95
      %s97 = sphi 0, %s95
      %s98 = sphi 0, %s97
      %s112 = sphi 0, %s98
      %s116 = sphi 0, %s116
      %s118 = sphi 0, %s116
      %s119 = sphi 0, %s118
      %s133 = sphi 0, %s119
      %s137 = sphi 0, %s137
      %s139 = sphi 0, %s137
      %s140 = sphi 0, %s139
      %s154 = sphi 0, %s140
      %s158 = sphi 0, %s158
      %s160 = sphi 0, %s158
      %s161 = sphi 0, %s160
      %s175 = sphi 0, %s161
      %s179 = sphi 0, %s179
      %s181 = sphi 0, %s179
      %s182 = sphi 0, %s181
      %s196 = sphi 0, %s182
      %s200 = sphi 0, %s200
      %s202 = sphi 0, %s200
      %s203 = sphi 0, %s202
      %s217 = sphi 0, %s203
      %s221 = sphi 0, %s221
      %s223 = sphi 0, %s221
      %s224 = sphi 0, %s223
      %s238 = sphi 0, %s224
      %s242 = sphi 0, %s242
      %s244 = sphi 0, %s242
      %s245 = sphi 0, %s244
      %s259 = sphi 0, %s245
      %s265 = sphi 0, %s267
      %s268 = sphi 0, %s265
      %s269 = sphi 0, %s268
      %s285 = sphi 0, %s269
    $region4: #{tpu_custom_call.1} parent=1 // loop_header_branch
      %22 = sbr.rel (%p20) target = $region8
    $region5: #{tpu_custom_call.1} parent=1 // loop_body
      %s24 = ssub.s32 %s19, 1
      %s25 = ssub.s32 %s19, 2
      %s26 = sadd.s32 %s19, 1
      %s27 = ssub.s32 %s19, %s26
      %p28 = scmp.eq.s32.totalorder %s27, 0
      %s30 = sadd.s32 %s29, 1
      %s31 = scalar_select %p28, %s29, %s30
      %p34 = pneg %p28
      %p35 = scmp.eq.s32.totalorder %s19, 1
      %p36 = por %p34, %p35
      %p37 = scmp.ne.s32.totalorder %s29, %s32
      %p38 = scmp.eq.s32.totalorder %s19, 0
      %p39 = por %p37, %p38
      %p40 = scmp.ne.s32.totalorder %s29, %s32
      %p41 = scmp.eq.s32.totalorder %s24, 1
      %p42 = por %p40, %p41
      %p43 = scmp.ne.s32.totalorder %s32, %s33
      %p44 = scmp.eq.s32.totalorder %s24, 0
      %p45 = por %p43, %p44
      %p46 = scmp.ne.s32.totalorder %s32, %s33
      %p47 = scmp.eq.s32.totalorder %s25, 1
      %p48 = por %p46, %p47
      %p50 = scmp.ne.s32.totalorder %s33, %s49
      %p51 = scmp.eq.s32.totalorder %s25, 0
      %p52 = por %p50, %p51
      %s54 = sadd.s32 %s53, 1
      %p57 = scmp.eq.s32.totalorder %s19, 1
      %p58 = scmp.ne.s32.totalorder %s53, %s55
      %p59 = scmp.eq.s32.totalorder %s19, 0
      %p60 = por %p58, %p59
      %p61 = scmp.ne.s32.totalorder %s53, %s55
      %p62 = scmp.eq.s32.totalorder %s24, 1
      %p63 = por %p61, %p62
      %p64 = scmp.ne.s32.totalorder %s55, %s56
      %p65 = scmp.eq.s32.totalorder %s24, 0
      %p66 = por %p64, %p65
      %p67 = scmp.ne.s32.totalorder %s55, %s56
      %p68 = scmp.eq.s32.totalorder %s25, 1
      %p69 = por %p67, %p68
      %p71 = scmp.ne.s32.totalorder %s56, %s70
      %p72 = scmp.eq.s32.totalorder %s25, 0
      %p73 = por %p71, %p72
      %s75 = sadd.s32 %s74, 1
      %p78 = scmp.eq.s32.totalorder %s19, 1
      %p79 = scmp.ne.s32.totalorder %s74, %s76
      %p80 = scmp.eq.s32.totalorder %s19, 0
      %p81 = por %p79, %p80
      %p82 = scmp.ne.s32.totalorder %s74, %s76
      %p83 = scmp.eq.s32.totalorder %s24, 1
      %p84 = por %p82, %p83
      %p85 = scmp.ne.s32.totalorder %s76, %s77
      %p86 = scmp.eq.s32.totalorder %s24, 0
      %p87 = por %p85, %p86
      %p88 = scmp.ne.s32.totalorder %s76, %s77
      %p89 = scmp.eq.s32.totalorder %s25, 1
      %p90 = por %p88, %p89
      %p92 = scmp.ne.s32.totalorder %s77, %s91
      %p93 = scmp.eq.s32.totalorder %s25, 0
      %p94 = por %p92, %p93
      %s96 = sadd.s32 %s95, 1
      %p99 = scmp.eq.s32.totalorder %s19, 1
      %p100 = scmp.ne.s32.totalorder %s95, %s97
      %p101 = scmp.eq.s32.totalorder %s19, 0
      %p102 = por %p100, %p101
      %p103 = scmp.ne.s32.totalorder %s95, %s97
      %p104 = scmp.eq.s32.totalorder %s24, 1
      %p105 = por %p103, %p104
      %p106 = scmp.ne.s32.totalorder %s97, %s98
      %p107 = scmp.eq.s32.totalorder %s24, 0
      %p108 = por %p106, %p107
      %p109 = scmp.ne.s32.totalorder %s97, %s98
      %p110 = scmp.eq.s32.totalorder %s25, 1
      %p111 = por %p109, %p110
      %p113 = scmp.ne.s32.totalorder %s98, %s112
      %p114 = scmp.eq.s32.totalorder %s25, 0
      %p115 = por %p113, %p114
      %s117 = sadd.s32 %s116, 1
      %p120 = scmp.eq.s32.totalorder %s19, 1
      %p121 = scmp.ne.s32.totalorder %s116, %s118
      %p122 = scmp.eq.s32.totalorder %s19, 0
      %p123 = por %p121, %p122
      %p124 = scmp.ne.s32.totalorder %s116, %s118
      %p125 = scmp.eq.s32.totalorder %s24, 1
      %p126 = por %p124, %p125
      %p127 = scmp.ne.s32.totalorder %s118, %s119
      %p128 = scmp.eq.s32.totalorder %s24, 0
      %p129 = por %p127, %p128
      %p130 = scmp.ne.s32.totalorder %s118, %s119
      %p131 = scmp.eq.s32.totalorder %s25, 1
      %p132 = por %p130, %p131
      %p134 = scmp.ne.s32.totalorder %s119, %s133
      %p135 = scmp.eq.s32.totalorder %s25, 0
      %p136 = por %p134, %p135
      %s138 = sadd.s32 %s137, 1
      %p141 = scmp.eq.s32.totalorder %s19, 1
      %p142 = scmp.ne.s32.totalorder %s137, %s139
      %p143 = scmp.eq.s32.totalorder %s19, 0
      %p144 = por %p142, %p143
      %p145 = scmp.ne.s32.totalorder %s137, %s139
      %p146 = scmp.eq.s32.totalorder %s24, 1
      %p147 = por %p145, %p146
      %p148 = scmp.ne.s32.totalorder %s139, %s140
      %p149 = scmp.eq.s32.totalorder %s24, 0
      %p150 = por %p148, %p149
      %p151 = scmp.ne.s32.totalorder %s139, %s140
      %p152 = scmp.eq.s32.totalorder %s25, 1
      %p153 = por %p151, %p152
      %p155 = scmp.ne.s32.totalorder %s140, %s154
      %p156 = scmp.eq.s32.totalorder %s25, 0
      %p157 = por %p155, %p156
      %s159 = sadd.s32 %s158, 1
      %p162 = scmp.eq.s32.totalorder %s19, 1
      %p163 = scmp.ne.s32.totalorder %s158, %s160
      %p164 = scmp.eq.s32.totalorder %s19, 0
      %p165 = por %p163, %p164
      %p166 = scmp.ne.s32.totalorder %s158, %s160
      %p167 = scmp.eq.s32.totalorder %s24, 1
      %p168 = por %p166, %p167
      %p169 = scmp.ne.s32.totalorder %s160, %s161
      %p170 = scmp.eq.s32.totalorder %s24, 0
      %p171 = por %p169, %p170
      %p172 = scmp.ne.s32.totalorder %s160, %s161
      %p173 = scmp.eq.s32.totalorder %s25, 1
      %p174 = por %p172, %p173
      %p176 = scmp.ne.s32.totalorder %s161, %s175
      %p177 = scmp.eq.s32.totalorder %s25, 0
      %p178 = por %p176, %p177
      %s180 = sadd.s32 %s179, 1
      %p183 = scmp.eq.s32.totalorder %s19, 1
      %p184 = scmp.ne.s32.totalorder %s179, %s181
      %p185 = scmp.eq.s32.totalorder %s19, 0
      %p186 = por %p184, %p185
      %p187 = scmp.ne.s32.totalorder %s179, %s181
      %p188 = scmp.eq.s32.totalorder %s24, 1
      %p189 = por %p187, %p188
      %p190 = scmp.ne.s32.totalorder %s181, %s182
      %p191 = scmp.eq.s32.totalorder %s24, 0
      %p192 = por %p190, %p191
      %p193 = scmp.ne.s32.totalorder %s181, %s182
      %p194 = scmp.eq.s32.totalorder %s25, 1
      %p195 = por %p193, %p194
      %p197 = scmp.ne.s32.totalorder %s182, %s196
      %p198 = scmp.eq.s32.totalorder %s25, 0
      %p199 = por %p197, %p198
      %s201 = sadd.s32 %s200, 1
      %p204 = scmp.eq.s32.totalorder %s19, 1
      %p205 = scmp.ne.s32.totalorder %s200, %s202
      %p206 = scmp.eq.s32.totalorder %s19, 0
      %p207 = por %p205, %p206
      %p208 = scmp.ne.s32.totalorder %s200, %s202
      %p209 = scmp.eq.s32.totalorder %s24, 1
      %p210 = por %p208, %p209
      %p211 = scmp.ne.s32.totalorder %s202, %s203
      %p212 = scmp.eq.s32.totalorder %s24, 0
      %p213 = por %p211, %p212
      %p214 = scmp.ne.s32.totalorder %s202, %s203
      %p215 = scmp.eq.s32.totalorder %s25, 1
      %p216 = por %p214, %p215
      %p218 = scmp.ne.s32.totalorder %s203, %s217
      %p219 = scmp.eq.s32.totalorder %s25, 0
      %p220 = por %p218, %p219
      %s222 = sadd.s32 %s221, 1
      %p225 = scmp.eq.s32.totalorder %s19, 1
      %p226 = scmp.ne.s32.totalorder %s221, %s223
      %p227 = scmp.eq.s32.totalorder %s19, 0
      %p228 = por %p226, %p227
      %p229 = scmp.ne.s32.totalorder %s221, %s223
      %p230 = scmp.eq.s32.totalorder %s24, 1
      %p231 = por %p229, %p230
      %p232 = scmp.ne.s32.totalorder %s223, %s224
      %p233 = scmp.eq.s32.totalorder %s24, 0
      %p234 = por %p232, %p233
      %p235 = scmp.ne.s32.totalorder %s223, %s224
      %p236 = scmp.eq.s32.totalorder %s25, 1
      %p237 = por %p235, %p236
      %p239 = scmp.ne.s32.totalorder %s224, %s238
      %p240 = scmp.eq.s32.totalorder %s25, 0
      %p241 = por %p239, %p240
      %s243 = sadd.s32 %s242, 1
      %p246 = scmp.eq.s32.totalorder %s19, 1
      %p247 = scmp.ne.s32.totalorder %s242, %s244
      %p248 = scmp.eq.s32.totalorder %s19, 0
      %p249 = por %p247, %p248
      %p250 = scmp.ne.s32.totalorder %s242, %s244
      %p251 = scmp.eq.s32.totalorder %s24, 1
      %p252 = por %p250, %p251
      %p253 = scmp.ne.s32.totalorder %s244, %s245
      %p254 = scmp.eq.s32.totalorder %s24, 0
      %p255 = por %p253, %p254
      %p256 = scmp.ne.s32.totalorder %s244, %s245
      %p257 = scmp.eq.s32.totalorder %s25, 1
      %p258 = por %p256, %p257
      %p260 = scmp.ne.s32.totalorder %s245, %s259
      %p261 = scmp.eq.s32.totalorder %s25, 0
      %p262 = por %p260, %p261
      %s263 = ssub.s32 %s19, %s26
      %p264 = scmp.eq.s32.totalorder %s263, 0
      %s266 = sadd.s32 %s265, 1
      %s267 = scalar_select %p264, %s265, %s266
      %p270 = pneg %p264
      %p271 = scmp.eq.s32.totalorder %s19, 1
      %p272 = por %p270, %p271
      %p273 = scmp.ne.s32.totalorder %s265, %s268
      %p274 = scmp.eq.s32.totalorder %s19, 0
      %p275 = por %p273, %p274
      %p276 = scmp.ne.s32.totalorder %s265, %s268
      %p277 = scmp.eq.s32.totalorder %s24, 1
      %p278 = por %p276, %p277
      %p279 = scmp.ne.s32.totalorder %s268, %s269
      %p280 = scmp.eq.s32.totalorder %s24, 0
      %p281 = por %p279, %p280
      %p282 = scmp.ne.s32.totalorder %s268, %s269
      %p283 = scmp.eq.s32.totalorder %s25, 1
      %p284 = por %p282, %p283
      %p286 = scmp.ne.s32.totalorder %s269, %s285
      %p287 = scmp.eq.s32.totalorder %s25, 0
      %p288 = por %p286, %p287
      %p289 = scmp.le.s32.totalorder 1, %s19
      %p290 = scmp.lt.s32.totalorder %s19, 3
      %p291 = pnand %p289, %p290
      %p292 = pneg %p291
      // Predicated region
      $region9: #{tpu_custom_call.1} parent=5 // pred_check
        _
      $region10: #{tpu_custom_call.1} parent=5 // pred_check_branch
        %294 = sbr.rel (%p291) target = $region12
      $region11: #{tpu_custom_call.1} parent=5 // pred_region
        %s295 = ssub.s32 %s19, 1
        // Predicated region
        $region13: #{tpu_custom_call.1} parent=11 // pred_check
          %p296 = pneg %p66
        $region14: #{tpu_custom_call.1} parent=11 // pred_check_branch
          %298 = sbr.rel (%p296) target = $region16
        $region15: #{tpu_custom_call.1} parent=11 // pred_region
          _
        $region16: #{tpu_custom_call.1} parent=11 // pred_fallthru
          _
        // Predicated region
        $region17: #{tpu_custom_call.1} parent=11 // pred_check
          %p299 = pneg %p87
        $region18: #{tpu_custom_call.1} parent=11 // pred_check_branch
          %301 = sbr.rel (%p299) target = $region20
        $region19: #{tpu_custom_call.1} parent=11 // pred_region
          _
        $region20: #{tpu_custom_call.1} parent=11 // pred_fallthru
          _
        // Predicated region
        $region21: #{tpu_custom_call.1} parent=11 // pred_check
          %p302 = pneg %p108
        $region22: #{tpu_custom_call.1} parent=11 // pred_check_branch
          %304 = sbr.rel (%p302) target = $region24
        $region23: #{tpu_custom_call.1} parent=11 // pred_region
          _
        $region24: #{tpu_custom_call.1} parent=11 // pred_fallthru
          _
        // Predicated region
        $region25: #{tpu_custom_call.1} parent=11 // pred_check
          %p305 = pneg %p129
        $region26: #{tpu_custom_call.1} parent=11 // pred_check_branch
          %307 = sbr.rel (%p305) target = $region28
        $region27: #{tpu_custom_call.1} parent=11 // pred_region
          _
        $region28: #{tpu_custom_call.1} parent=11 // pred_fallthru
          _
        // Predicated region
        $region29: #{tpu_custom_call.1} parent=11 // pred_check
          %p308 = pneg %p150
        $region30: #{tpu_custom_call.1} parent=11 // pred_check_branch
          %310 = sbr.rel (%p308) target = $region32
        $region31: #{tpu_custom_call.1} parent=11 // pred_region
          _
        $region32: #{tpu_custom_call.1} parent=11 // pred_fallthru
          _
        // Predicated region
        $region33: #{tpu_custom_call.1} parent=11 // pred_check
          %p311 = pneg %p171
        $region34: #{tpu_custom_call.1} parent=11 // pred_check_branch
          %313 = sbr.rel (%p311) target = $region36
        $region35: #{tpu_custom_call.1} parent=11 // pred_region
          _
        $region36: #{tpu_custom_call.1} parent=11 // pred_fallthru
          _
        // Predicated region
        $region37: #{tpu_custom_call.1} parent=11 // pred_check
          %p314 = pneg %p192
        $region38: #{tpu_custom_call.1} parent=11 // pred_check_branch
          %316 = sbr.rel (%p314) target = $region40
        $region39: #{tpu_custom_call.1} parent=11 // pred_region
          _
        $region40: #{tpu_custom_call.1} parent=11 // pred_fallthru
          _
        // Predicated region
        $region41: #{tpu_custom_call.1} parent=11 // pred_check
          %p317 = pneg %p213
        $region42: #{tpu_custom_call.1} parent=11 // pred_check_branch
          %319 = sbr.rel (%p317) target = $region44
        $region43: #{tpu_custom_call.1} parent=11 // pred_region
          _
        $region44: #{tpu_custom_call.1} parent=11 // pred_fallthru
          _
        // Predicated region
        $region45: #{tpu_custom_call.1} parent=11 // pred_check
          %p320 = pneg %p234
        $region46: #{tpu_custom_call.1} parent=11 // pred_check_branch
          %322 = sbr.rel (%p320) target = $region48
        $region47: #{tpu_custom_call.1} parent=11 // pred_region
          _
        $region48: #{tpu_custom_call.1} parent=11 // pred_fallthru
          _
        // Predicated region
        $region49: #{tpu_custom_call.1} parent=11 // pred_check
          %p323 = pneg %p255
        $region50: #{tpu_custom_call.1} parent=11 // pred_check_branch
          %325 = sbr.rel (%p323) target = $region52
        $region51: #{tpu_custom_call.1} parent=11 // pred_region
          _
        $region52: #{tpu_custom_call.1} parent=11 // pred_fallthru
          _
      $region12: #{tpu_custom_call.1} parent=5 // pred_fallthru
        _
      %p326 = scmp.lt.s32.totalorder %s19, 2
      // Predicated region
      $region53: #{tpu_custom_call.1} parent=5 // pred_check
        %p327 = pneg %p326
      $region54: #{tpu_custom_call.1} parent=5 // pred_check_branch
        %329 = sbr.rel (%p327) target = $region56
      $region55: #{tpu_custom_call.1} parent=5 // pred_region
        // Predicated region
        $region57: #{tpu_custom_call.1} parent=55 // pred_check
          %p330 = pneg %p39
        $region58: #{tpu_custom_call.1} parent=55 // pred_check_branch
          %332 = sbr.rel (%p330) target = $region60
        $region59: #{tpu_custom_call.1} parent=55 // pred_region
          %s333 = sand.u32 %s29, 1
          %s334 = sand.u32 %s29, 1
          %s335 = smul.addr %s334, 128
          %s336 = scalar_lea.vmem [#allocation5], %s335
          %s337 = smul.addr %s19, 8
          %s338 = scalar_lea.vmem %s0, %s337
          // Predicated region
          $region61: #{tpu_custom_call.1} parent=59 // pred_check
            _
          $region62: #{tpu_custom_call.1} parent=59 // pred_check_branch
            %340 = sbr.rel (0) target = $region64
          $region63: #{tpu_custom_call.1} parent=59 // pred_region
            // Predicated region
            $region65: #{tpu_custom_call.1} parent=63 // pred_check
              _
            $region66: #{tpu_custom_call.1} parent=63 // pred_check_branch
              %342 = sbr.rel (0) target = $region68
            $region67: #{tpu_custom_call.1} parent=63 // pred_region
              // Predicated region
              $region80: #{tpu_custom_call.1} parent=67 // pred_check
                _
              $region81: #{tpu_custom_call.1} parent=67 // pred_check_branch
                %387 = sbr.rel (0) target = $region83
              $region82: #{tpu_custom_call.1} parent=67 // pred_region
                loop: start=0, step=1, limit=1
                $region84: #{tpu_custom_call.1} parent=82 // loop_pre_header
                  _
                $region85: #{tpu_custom_call.1} parent=82 // loop_header
                  %s389 = sphi 0, %s393
                  %p390 = scmp.ge.s32.totalorder %s389, 1
                  %s394 = sphi %s338, %s338
                  %s395 = sphi %s336, %s336
                $region86: #{tpu_custom_call.1} parent=82 // loop_header_branch
                  %392 = sbr.rel (%p390) target = $region90
                $region87: #{tpu_custom_call.1} parent=82 // loop_body
                  %v396 = vld [vmem:[%s394] sm:$0xff]
                  %397 = vst [vmem:[%s395] sm:$0xff] %v396
                  %v398 = vld [vmem:[%s394 + $0x10] sm:$0xff]
                  %399 = vst [vmem:[%s395 + $0x8] sm:$0xff] %v398
                  %v400 = vld [vmem:[%s394 + $0x20] sm:$0xff]
                  %401 = vst [vmem:[%s395 + $0x10] sm:$0xff] %v400
                  %v402 = vld [vmem:[%s394 + $0x30] sm:$0xff]
                  %403 = vst [vmem:[%s395 + $0x18] sm:$0xff] %v402
                  %v404 = vld [vmem:[%s394 + $0x40] sm:$0xff]
                  %405 = vst [vmem:[%s395 + $0x20] sm:$0xff] %v404
                  %v406 = vld [vmem:[%s394 + $0x50] sm:$0xff]
                  %407 = vst [vmem:[%s395 + $0x28] sm:$0xff] %v406
                  %v408 = vld [vmem:[%s394 + $0x60] sm:$0xff]
                  %409 = vst [vmem:[%s395 + $0x30] sm:$0xff] %v408
                  %v410 = vld [vmem:[%s394 + $0x70] sm:$0xff]
                  %411 = vst [vmem:[%s395 + $0x38] sm:$0xff] %v410
                  %v412 = vld [vmem:[%s394 + $0x80] sm:$0xff]
                  %413 = vst [vmem:[%s395 + $0x40] sm:$0xff] %v412
                  %v414 = vld [vmem:[%s394 + $0x90] sm:$0xff]
                  %415 = vst [vmem:[%s395 + $0x48] sm:$0xff] %v414
                  %v416 = vld [vmem:[%s394 + $0xa0] sm:$0xff]
                  %417 = vst [vmem:[%s395 + $0x50] sm:$0xff] %v416
                  %v418 = vld [vmem:[%s394 + $0xb0] sm:$0xff]
                  %419 = vst [vmem:[%s395 + $0x58] sm:$0xff] %v418
                  %v420 = vld [vmem:[%s394 + $0xc0] sm:$0xff]
                  %421 = vst [vmem:[%s395 + $0x60] sm:$0xff] %v420
                  %v422 = vld [vmem:[%s394 + $0xd0] sm:$0xff]
                  %423 = vst [vmem:[%s395 + $0x68] sm:$0xff] %v422
                  %v424 = vld [vmem:[%s394 + $0xe0] sm:$0xff]
                  %425 = vst [vmem:[%s395 + $0x70] sm:$0xff] %v424
                  %v426 = vld [vmem:[%s394 + $0xf0] sm:$0xff]
                  %427 = vst [vmem:[%s395 + $0x78] sm:$0xff] %v426
                $region88: #{tpu_custom_call.1} parent=82 // loop_footer
                  %s393 = sadd.s32 1, %s389
                $region89: #{tpu_custom_call.1} parent=82 // loop_footer_branch
                  %388 = sbr.rel target = $region85
                $region90: #{tpu_custom_call.1} parent=82 // loop_exit
                  _
              $region83: #{tpu_custom_call.1} parent=67 // pred_fallthru
                _
              // Predicated region
              $region91: #{tpu_custom_call.1} parent=67 // pred_check
                _
              $region92: #{tpu_custom_call.1} parent=67 // pred_check_branch
                %429 = sbr.rel target = $region94
              $region93: #{tpu_custom_call.1} parent=67 // pred_region
                _
              $region94: #{tpu_custom_call.1} parent=67 // pred_fallthru
                _
            $region68: #{tpu_custom_call.1} parent=63 // pred_fallthru
              _
            // Predicated region
            $region69: #{tpu_custom_call.1} parent=63 // pred_check
              _
            $region70: #{tpu_custom_call.1} parent=63 // pred_check_branch
              %344 = sbr.rel target = $region72
            $region71: #{tpu_custom_call.1} parent=63 // pred_region
              loop: start=0, step=1, limit=1
              $region73: #{tpu_custom_call.1} parent=71 // loop_pre_header
                _
              $region74: #{tpu_custom_call.1} parent=71 // loop_header
                %s347 = sphi 0, %s351
                %p348 = scmp.ge.s32.totalorder %s347, 1
                %s352 = sphi %s338, %s338
                %s353 = sphi %s336, %s336
              $region75: #{tpu_custom_call.1} parent=71 // loop_header_branch
                %350 = sbr.rel (%p348) target = $region79
              $region76: #{tpu_custom_call.1} parent=71 // loop_body
                %v354 = vld [vmem:[%s352] sm:$0xff]
                %355 = vst [vmem:[%s353] sm:$0xff] %v354
                %v356 = vld [vmem:[%s352 + $0x10] sm:$0xff]
                %357 = vst [vmem:[%s353 + $0x8] sm:$0xff] %v356
                %v358 = vld [vmem:[%s352 + $0x20] sm:$0xff]
                %359 = vst [vmem:[%s353 + $0x10] sm:$0xff] %v358
                %v360 = vld [vmem:[%s352 + $0x30] sm:$0xff]
                %361 = vst [vmem:[%s353 + $0x18] sm:$0xff] %v360
                %v362 = vld [vmem:[%s352 + $0x40] sm:$0xff]
                %363 = vst [vmem:[%s353 + $0x20] sm:$0xff] %v362
                %v364 = vld [vmem:[%s352 + $0x50] sm:$0xff]
                %365 = vst [vmem:[%s353 + $0x28] sm:$0xff] %v364
                %v366 = vld [vmem:[%s352 + $0x60] sm:$0xff]
                %367 = vst [vmem:[%s353 + $0x30] sm:$0xff] %v366
                %v368 = vld [vmem:[%s352 + $0x70] sm:$0xff]
                %369 = vst [vmem:[%s353 + $0x38] sm:$0xff] %v368
                %v370 = vld [vmem:[%s352 + $0x80] sm:$0xff]
                %371 = vst [vmem:[%s353 + $0x40] sm:$0xff] %v370
                %v372 = vld [vmem:[%s352 + $0x90] sm:$0xff]
                %373 = vst [vmem:[%s353 + $0x48] sm:$0xff] %v372
                %v374 = vld [vmem:[%s352 + $0xa0] sm:$0xff]
                %375 = vst [vmem:[%s353 + $0x50] sm:$0xff] %v374
                %v376 = vld [vmem:[%s352 + $0xb0] sm:$0xff]
                %377 = vst [vmem:[%s353 + $0x58] sm:$0xff] %v376
                %v378 = vld [vmem:[%s352 + $0xc0] sm:$0xff]
                %379 = vst [vmem:[%s353 + $0x60] sm:$0xff] %v378
                %v380 = vld [vmem:[%s352 + $0xd0] sm:$0xff]
                %381 = vst [vmem:[%s353 + $0x68] sm:$0xff] %v380
                %v382 = vld [vmem:[%s352 + $0xe0] sm:$0xff]
                %383 = vst [vmem:[%s353 + $0x70] sm:$0xff] %v382
                %v384 = vld [vmem:[%s352 + $0xf0] sm:$0xff]
                %385 = vst [vmem:[%s353 + $0x78] sm:$0xff] %v384
              $region77: #{tpu_custom_call.1} parent=71 // loop_footer
                %s351 = sadd.s32 1, %s347
              $region78: #{tpu_custom_call.1} parent=71 // loop_footer_branch
                %346 = sbr.rel target = $region74
              $region79: #{tpu_custom_call.1} parent=71 // loop_exit
                _
            $region72: #{tpu_custom_call.1} parent=63 // pred_fallthru
              _
          $region64: #{tpu_custom_call.1} parent=59 // pred_fallthru
            _
          %430 = vnop
        $region60: #{tpu_custom_call.1} parent=55 // pred_fallthru
          _
      $region56: #{tpu_custom_call.1} parent=5 // pred_fallthru
        _
      %p431 = scmp.le.s32.totalorder 1, %s19
      %p432 = scmp.lt.s32.totalorder %s19, 3
      %p433 = pnand %p431, %p432
      %p434 = pneg %p433
      // Predicated region
      $region95: #{tpu_custom_call.1} parent=5 // pred_check
        _
      $region96: #{tpu_custom_call.1} parent=5 // pred_check_branch
        %436 = sbr.rel (%p433) target = $region98
      $region97: #{tpu_custom_call.1} parent=5 // pred_region
        %s437 = ssub.s32 %s19, 1
        %s438 = sand.u32 %s32, 1
        %s439 = sand.u32 %s32, 1
        %s440 = smul.addr %s439, 128
        %s441 = scalar_lea.vmem [#allocation5], %s440
        // Predicated region
        $region99: #{tpu_custom_call.1} parent=97 // pred_check
          %p442 = pneg %p45
        $region100: #{tpu_custom_call.1} parent=97 // pred_check_branch
          %444 = sbr.rel (%p442) target = $region102
        $region101: #{tpu_custom_call.1} parent=97 // pred_region
          _
        $region102: #{tpu_custom_call.1} parent=97 // pred_fallthru
          _
        %s445 = sand.u32 %s32, 1
        %s446 = sand.u32 %s32, 1
        %s447 = smul.addr %s446, 128
        %s448 = scalar_lea.vmem [#allocation5], %s447
        %p449 = pneg %p45
        %p450 = pneg %p42
        %p451 = pneg %p66
        %p452 = pneg %p63
        %p453 = pneg %p87
        %p454 = pneg %p84
        %p455 = pneg %p108
        %p456 = pneg %p105
        %p457 = pneg %p129
        %p458 = pneg %p126
        %p459 = pneg %p150
        %p460 = pneg %p147
        %p461 = pneg %p171
        %p462 = pneg %p168
        %p463 = pneg %p192
        %p464 = pneg %p189
        %p465 = pneg %p213
        %p466 = pneg %p210
        %p467 = pneg %p234
        %p468 = pneg %p231
        %p469 = pneg %p255
        %p470 = pneg %p252
        %p471 = pneg %p281
        %p472 = pneg %p278
        %p473 = scmp.lt.s32.totalorder %s24, 1
        %s474 = scalar_select %p473, %s24, 1
        %s475 = smul.addr %s474, 8
        %s476 = scalar_lea.vmem %s11, %s475
        %p477 = scmp.lt.s32.totalorder %s24, 1
        %s478 = scalar_select %p477, %s24, 1
        %s479 = smul.addr %s478, 8
        %s480 = scalar_lea.vmem %s11, %s479
        %v481 = vld [vmem:[%s441] sm:$0xff]
        %v482 = vld [vmem:[%s441 + $0x8] sm:$0xff]
        %v483 = vld [vmem:[%s441 + $0x10] sm:$0xff]
        %v484 = vld [vmem:[%s441 + $0x18] sm:$0xff]
        %v485 = vld [vmem:[%s441 + $0x20] sm:$0xff]
        %v486 = vld [vmem:[%s441 + $0x28] sm:$0xff]
        %v487 = vld [vmem:[%s441 + $0x30] sm:$0xff]
        %v488 = vld [vmem:[%s441 + $0x38] sm:$0xff]
        %v489 = vld [vmem:[%s441 + $0x40] sm:$0xff]
        %v490 = vld [vmem:[%s441 + $0x48] sm:$0xff]
        %v491 = vld [vmem:[%s441 + $0x50] sm:$0xff]
        %v492 = vld [vmem:[%s441 + $0x58] sm:$0xff]
        %v493 = vld [vmem:[%s441 + $0x60] sm:$0xff]
        %v494 = vld [vmem:[%s441 + $0x68] sm:$0xff]
        %v495 = vld [vmem:[%s441 + $0x70] sm:$0xff]
        %v496 = vld [vmem:[%s441 + $0x78] sm:$0xff]
        %vm497 = vcmask 7168
        %498 = vst.msk [vmem:[#allocation2] sm:$0xff] %vm497, 0.0
        %499 = vst.msk [vmem:[#allocation2 + $0x8] sm:$0xff] %vm497, 0.0
        %s500 = scalar_lea.vmem [#allocation2], 144
        %501 = vst.msk [vmem:[%s500] sm:$0xff] %vm497, 0.0
        %502 = vst.msk [vmem:[%s500 + $0x8] sm:$0xff] %vm497, 0.0
        %s503 = scalar_lea.vmem [#allocation2], 16
        %504 = vst.msk [vmem:[%s503] sm:$0xff] %vm497, %v481
        %505 = vst.msk [vmem:[%s503 + $0x8] sm:$0xff] %vm497, %v482
        %506 = vst.msk [vmem:[%s503 + $0x10] sm:$0xff] %vm497, %v483
        %507 = vst.msk [vmem:[%s503 + $0x18] sm:$0xff] %vm497, %v484
        %508 = vst.msk [vmem:[%s503 + $0x20] sm:$0xff] %vm497, %v485
        %509 = vst.msk [vmem:[%s503 + $0x28] sm:$0xff] %vm497, %v486
        %510 = vst.msk [vmem:[%s503 + $0x30] sm:$0xff] %vm497, %v487
        %511 = vst.msk [vmem:[%s503 + $0x38] sm:$0xff] %vm497, %v488
        %512 = vst.msk [vmem:[%s503 + $0x40] sm:$0xff] %vm497, %v489
        %513 = vst.msk [vmem:[%s503 + $0x48] sm:$0xff] %vm497, %v490
        %514 = vst.msk [vmem:[%s503 + $0x50] sm:$0xff] %vm497, %v491
        %515 = vst.msk [vmem:[%s503 + $0x58] sm:$0xff] %vm497, %v492
        %516 = vst.msk [vmem:[%s503 + $0x60] sm:$0xff] %vm497, %v493
        %517 = vst.msk [vmem:[%s503 + $0x68] sm:$0xff] %vm497, %v494
        %518 = vst.msk [vmem:[%s503 + $0x70] sm:$0xff] %vm497, %v495
        %519 = vst.msk [vmem:[%s503 + $0x78] sm:$0xff] %vm497, %v496
        %v520 = vld [vmem:[%s1] sm:$0x1]
        %v521 = vld [vmem:[%s1 + $0x1] sm:$0x1]
        %v522 = vld [vmem:[%s1 + $0x2] sm:$0x1]
        %v523 = vld [vmem:[%s1 + $0x3] sm:$0x1]
        %v524 = vld [vmem:[%s1 + $0x4] sm:$0x1]
        %v525 = vld [vmem:[#allocation2] sm:$0xff]
        %v526 = vld [vmem:[#allocation2 + $0x8] sm:$0xff]
        %v527 = vld [vmem:[#allocation2 + $0x10] sm:$0xff]
        %v528 = vld [vmem:[#allocation2 + $0x18] sm:$0xff]
        %v529 = vld [vmem:[#allocation2 + $0x20] sm:$0xff]
        %v530 = vld [vmem:[#allocation2 + $0x28] sm:$0xff]
        %v531 = vld [vmem:[#allocation2 + $0x30] sm:$0xff]
        %v532 = vld [vmem:[#allocation2 + $0x38] sm:$0xff]
        %v533 = vld [vmem:[#allocation2 + $0x40] sm:$0xff]
        %v534 = vld [vmem:[#allocation2 + $0x48] sm:$0xff]
        %v535 = vld [vmem:[#allocation2 + $0x50] sm:$0xff]
        %v536 = vld [vmem:[#allocation2 + $0x58] sm:$0xff]
        %v537 = vld [vmem:[#allocation2 + $0x60] sm:$0xff]
        %v538 = vld [vmem:[#allocation2 + $0x68] sm:$0xff]
        %v539 = vld [vmem:[#allocation2 + $0x70] sm:$0xff]
        %v540 = vld [vmem:[#allocation2 + $0x78] sm:$0xff]
        %542 = vset.pattern.permute.xlu0 0
        %543 = vperm.xlu0 %542, %v525
        %v544 = vpop.permute.xlu0 %543
        %547 = vset.pattern.permute.xlu0 0
        %548 = vperm.xlu0 %547, %v526
        %v549 = vpop.permute.xlu0 %548
        %552 = vset.pattern.permute.xlu0 0
        %553 = vperm.xlu0 %552, %v527
        %v554 = vpop.permute.xlu0 %553
        %557 = vset.pattern.permute.xlu0 0
        %558 = vperm.xlu0 %557, %v528
        %v559 = vpop.permute.xlu0 %558
        %562 = vset.pattern.permute.xlu0 0
        %563 = vperm.xlu0 %562, %v529
        %v564 = vpop.permute.xlu0 %563
        %567 = vset.pattern.permute.xlu0 0
        %568 = vperm.xlu0 %567, %v530
        %v569 = vpop.permute.xlu0 %568
        %572 = vset.pattern.permute.xlu0 0
        %573 = vperm.xlu0 %572, %v531
        %v574 = vpop.permute.xlu0 %573
        %577 = vset.pattern.permute.xlu0 0
        %578 = vperm.xlu0 %577, %v532
        %v579 = vpop.permute.xlu0 %578
        %582 = vset.pattern.permute.xlu0 0
        %583 = vperm.xlu0 %582, %v533
        %v584 = vpop.permute.xlu0 %583
        %587 = vset.pattern.permute.xlu0 0
        %588 = vperm.xlu0 %587, %v534
        %v589 = vpop.permute.xlu0 %588
        %592 = vset.pattern.permute.xlu0 0
        %593 = vperm.xlu0 %592, %v535
        %v594 = vpop.permute.xlu0 %593
        %597 = vset.pattern.permute.xlu0 0
        %598 = vperm.xlu0 %597, %v536
        %v599 = vpop.permute.xlu0 %598
        %602 = vset.pattern.permute.xlu0 0
        %603 = vperm.xlu0 %602, %v537
        %v604 = vpop.permute.xlu0 %603
        %607 = vset.pattern.permute.xlu0 0
        %608 = vperm.xlu0 %607, %v538
        %v609 = vpop.permute.xlu0 %608
        %612 = vset.pattern.permute.xlu0 0
        %613 = vperm.xlu0 %612, %v539
        %v614 = vpop.permute.xlu0 %613
        %617 = vset.pattern.permute.xlu0 0
        %618 = vperm.xlu0 %617, %v540
        %v619 = vpop.permute.xlu0 %618
        %v622 = vlaneseq
        %v623 = vshrl.u32 %v622, 7
        %v624 = vsub.s32 0, %v623
        %v625 = vrot.slane %v520, %v624
        %v627 = vmul.f32 %v544, %v625
        %v628 = vmul.f32 %v549, %v625
        %v629 = vmul.f32 %v554, %v625
        %v630 = vmul.f32 %v559, %v625
        %v631 = vmul.f32 %v564, %v625
        %v632 = vmul.f32 %v569, %v625
        %v633 = vmul.f32 %v574, %v625
        %v634 = vmul.f32 %v579, %v625
        %v635 = vmul.f32 %v584, %v625
        %v636 = vmul.f32 %v589, %v625
        %v637 = vmul.f32 %v594, %v625
        %v638 = vmul.f32 %v599, %v625
        %v639 = vmul.f32 %v604, %v625
        %v640 = vmul.f32 %v609, %v625
        %v641 = vmul.f32 %v614, %v625
        %v642 = vmul.f32 %v619, %v625
        %v643 = vadd.f32 %v627, 0.0
        %v644 = vadd.f32 %v628, 0.0
        %v645 = vadd.f32 %v629, 0.0
        %v646 = vadd.f32 %v630, 0.0
        %v647 = vadd.f32 %v631, 0.0
        %v648 = vadd.f32 %v632, 0.0
        %v649 = vadd.f32 %v633, 0.0
        %v650 = vadd.f32 %v634, 0.0
        %v651 = vadd.f32 %v635, 0.0
        %v652 = vadd.f32 %v636, 0.0
        %v653 = vadd.f32 %v637, 0.0
        %v654 = vadd.f32 %v638, 0.0
        %v655 = vadd.f32 %v639, 0.0
        %v656 = vadd.f32 %v640, 0.0
        %v657 = vadd.f32 %v641, 0.0
        %v658 = vadd.f32 %v642, 0.0
        %s659 = scalar_lea.vmem [#allocation2], 8
        %v660 = vld [vmem:[%s659] sm:$0xff]
        %v661 = vld [vmem:[%s659 + $0x8] sm:$0xff]
        %v662 = vld [vmem:[%s659 + $0x10] sm:$0xff]
        %v663 = vld [vmem:[%s659 + $0x18] sm:$0xff]
        %v664 = vld [vmem:[%s659 + $0x20] sm:$0xff]
        %v665 = vld [vmem:[%s659 + $0x28] sm:$0xff]
        %v666 = vld [vmem:[%s659 + $0x30] sm:$0xff]
        %v667 = vld [vmem:[%s659 + $0x38] sm:$0xff]
        %v668 = vld [vmem:[%s659 + $0x40] sm:$0xff]
        %v669 = vld [vmem:[%s659 + $0x48] sm:$0xff]
        %v670 = vld [vmem:[%s659 + $0x50] sm:$0xff]
        %v671 = vld [vmem:[%s659 + $0x58] sm:$0xff]
        %v672 = vld [vmem:[%s659 + $0x60] sm:$0xff]
        %v673 = vld [vmem:[%s659 + $0x68] sm:$0xff]
        %v674 = vld [vmem:[%s659 + $0x70] sm:$0xff]
        %v675 = vld [vmem:[%s659 + $0x78] sm:$0xff]
        %677 = vset.pattern.permute.xlu0 0
        %678 = vperm.xlu0 %677, %v660
        %v679 = vpop.permute.xlu0 %678
        %682 = vset.pattern.permute.xlu0 0
        %683 = vperm.xlu0 %682, %v661
        %v684 = vpop.permute.xlu0 %683
        %687 = vset.pattern.permute.xlu0 0
        %688 = vperm.xlu0 %687, %v662
        %v689 = vpop.permute.xlu0 %688
        %692 = vset.pattern.permute.xlu0 0
        %693 = vperm.xlu0 %692, %v663
        %v694 = vpop.permute.xlu0 %693
        %697 = vset.pattern.permute.xlu0 0
        %698 = vperm.xlu0 %697, %v664
        %v699 = vpop.permute.xlu0 %698
        %702 = vset.pattern.permute.xlu0 0
        %703 = vperm.xlu0 %702, %v665
        %v704 = vpop.permute.xlu0 %703
        %707 = vset.pattern.permute.xlu0 0
        %708 = vperm.xlu0 %707, %v666
        %v709 = vpop.permute.xlu0 %708
        %712 = vset.pattern.permute.xlu0 0
        %713 = vperm.xlu0 %712, %v667
        %v714 = vpop.permute.xlu0 %713
        %717 = vset.pattern.permute.xlu0 0
        %718 = vperm.xlu0 %717, %v668
        %v719 = vpop.permute.xlu0 %718
        %722 = vset.pattern.permute.xlu0 0
        %723 = vperm.xlu0 %722, %v669
        %v724 = vpop.permute.xlu0 %723
        %727 = vset.pattern.permute.xlu0 0
        %728 = vperm.xlu0 %727, %v670
        %v729 = vpop.permute.xlu0 %728
        %732 = vset.pattern.permute.xlu0 0
        %733 = vperm.xlu0 %732, %v671
        %v734 = vpop.permute.xlu0 %733
        %737 = vset.pattern.permute.xlu0 0
        %738 = vperm.xlu0 %737, %v672
        %v739 = vpop.permute.xlu0 %738
        %742 = vset.pattern.permute.xlu0 0
        %743 = vperm.xlu0 %742, %v673
        %v744 = vpop.permute.xlu0 %743
        %747 = vset.pattern.permute.xlu0 0
        %748 = vperm.xlu0 %747, %v674
        %v749 = vpop.permute.xlu0 %748
        %752 = vset.pattern.permute.xlu0 0
        %753 = vperm.xlu0 %752, %v675
        %v754 = vpop.permute.xlu0 %753
        %v757 = vlaneseq
        %v758 = vshrl.u32 %v757, 7
        %v759 = vsub.s32 0, %v758
        %v760 = vrot.slane %v521, %v759
        %v762 = vmul.f32 %v679, %v760
        %v763 = vmul.f32 %v684, %v760
        %v764 = vmul.f32 %v689, %v760
        %v765 = vmul.f32 %v694, %v760
        %v766 = vmul.f32 %v699, %v760
        %v767 = vmul.f32 %v704, %v760
        %v768 = vmul.f32 %v709, %v760
        %v769 = vmul.f32 %v714, %v760
        %v770 = vmul.f32 %v719, %v760
        %v771 = vmul.f32 %v724, %v760
        %v772 = vmul.f32 %v729, %v760
        %v773 = vmul.f32 %v734, %v760
        %v774 = vmul.f32 %v739, %v760
        %v775 = vmul.f32 %v744, %v760
        %v776 = vmul.f32 %v749, %v760
        %v777 = vmul.f32 %v754, %v760
        %v778 = vadd.f32 %v643, %v762
        %v779 = vadd.f32 %v644, %v763
        %v780 = vadd.f32 %v645, %v764
        %v781 = vadd.f32 %v646, %v765
        %v782 = vadd.f32 %v647, %v766
        %v783 = vadd.f32 %v648, %v767
        %v784 = vadd.f32 %v649, %v768
        %v785 = vadd.f32 %v650, %v769
        %v786 = vadd.f32 %v651, %v770
        %v787 = vadd.f32 %v652, %v771
        %v788 = vadd.f32 %v653, %v772
        %v789 = vadd.f32 %v654, %v773
        %v790 = vadd.f32 %v655, %v774
        %v791 = vadd.f32 %v656, %v775
        %v792 = vadd.f32 %v657, %v776
        %v793 = vadd.f32 %v658, %v777
        %v794 = vld [vmem:[%s503] sm:$0xff]
        %v795 = vld [vmem:[%s503 + $0x8] sm:$0xff]
        %v796 = vld [vmem:[%s503 + $0x10] sm:$0xff]
        %v797 = vld [vmem:[%s503 + $0x18] sm:$0xff]
        %v798 = vld [vmem:[%s503 + $0x20] sm:$0xff]
        %v799 = vld [vmem:[%s503 + $0x28] sm:$0xff]
        %v800 = vld [vmem:[%s503 + $0x30] sm:$0xff]
        %v801 = vld [vmem:[%s503 + $0x38] sm:$0xff]
        %v802 = vld [vmem:[%s503 + $0x40] sm:$0xff]
        %v803 = vld [vmem:[%s503 + $0x48] sm:$0xff]
        %v804 = vld [vmem:[%s503 + $0x50] sm:$0xff]
        %v805 = vld [vmem:[%s503 + $0x58] sm:$0xff]
        %v806 = vld [vmem:[%s503 + $0x60] sm:$0xff]
        %v807 = vld [vmem:[%s503 + $0x68] sm:$0xff]
        %v808 = vld [vmem:[%s503 + $0x70] sm:$0xff]
        %v809 = vld [vmem:[%s503 + $0x78] sm:$0xff]
        %811 = vset.pattern.permute.xlu0 0
        %812 = vperm.xlu0 %811, %v794
        %v813 = vpop.permute.xlu0 %812
        %816 = vset.pattern.permute.xlu0 0
        %817 = vperm.xlu0 %816, %v795
        %v818 = vpop.permute.xlu0 %817
        %821 = vset.pattern.permute.xlu0 0
        %822 = vperm.xlu0 %821, %v796
        %v823 = vpop.permute.xlu0 %822
        %826 = vset.pattern.permute.xlu0 0
        %827 = vperm.xlu0 %826, %v797
        %v828 = vpop.permute.xlu0 %827
        %831 = vset.pattern.permute.xlu0 0
        %832 = vperm.xlu0 %831, %v798
        %v833 = vpop.permute.xlu0 %832
        %836 = vset.pattern.permute.xlu0 0
        %837 = vperm.xlu0 %836, %v799
        %v838 = vpop.permute.xlu0 %837
        %841 = vset.pattern.permute.xlu0 0
        %842 = vperm.xlu0 %841, %v800
        %v843 = vpop.permute.xlu0 %842
        %846 = vset.pattern.permute.xlu0 0
        %847 = vperm.xlu0 %846, %v801
        %v848 = vpop.permute.xlu0 %847
        %851 = vset.pattern.permute.xlu0 0
        %852 = vperm.xlu0 %851, %v802
        %v853 = vpop.permute.xlu0 %852
        %856 = vset.pattern.permute.xlu0 0
        %857 = vperm.xlu0 %856, %v803
        %v858 = vpop.permute.xlu0 %857
        %861 = vset.pattern.permute.xlu0 0
        %862 = vperm.xlu0 %861, %v804
        %v863 = vpop.permute.xlu0 %862
        %866 = vset.pattern.permute.xlu0 0
        %867 = vperm.xlu0 %866, %v805
        %v868 = vpop.permute.xlu0 %867
        %871 = vset.pattern.permute.xlu0 0
        %872 = vperm.xlu0 %871, %v806
        %v873 = vpop.permute.xlu0 %872
        %876 = vset.pattern.permute.xlu0 0
        %877 = vperm.xlu0 %876, %v807
        %v878 = vpop.permute.xlu0 %877
        %881 = vset.pattern.permute.xlu0 0
        %882 = vperm.xlu0 %881, %v808
        %v883 = vpop.permute.xlu0 %882
        %886 = vset.pattern.permute.xlu0 0
        %887 = vperm.xlu0 %886, %v809
        %v888 = vpop.permute.xlu0 %887
        %v891 = vlaneseq
        %v892 = vshrl.u32 %v891, 7
        %v893 = vsub.s32 0, %v892
        %v894 = vrot.slane %v522, %v893
        %v896 = vmul.f32 %v813, %v894
        %v897 = vmul.f32 %v818, %v894
        %v898 = vmul.f32 %v823, %v894
        %v899 = vmul.f32 %v828, %v894
        %v900 = vmul.f32 %v833, %v894
        %v901 = vmul.f32 %v838, %v894
        %v902 = vmul.f32 %v843, %v894
        %v903 = vmul.f32 %v848, %v894
        %v904 = vmul.f32 %v853, %v894
        %v905 = vmul.f32 %v858, %v894
        %v906 = vmul.f32 %v863, %v894
        %v907 = vmul.f32 %v868, %v894
        %v908 = vmul.f32 %v873, %v894
        %v909 = vmul.f32 %v878, %v894
        %v910 = vmul.f32 %v883, %v894
        %v911 = vmul.f32 %v888, %v894
        %v912 = vadd.f32 %v778, %v896
        %v913 = vadd.f32 %v779, %v897
        %v914 = vadd.f32 %v780, %v898
        %v915 = vadd.f32 %v781, %v899
        %v916 = vadd.f32 %v782, %v900
        %v917 = vadd.f32 %v783, %v901
        %v918 = vadd.f32 %v784, %v902
        %v919 = vadd.f32 %v785, %v903
        %v920 = vadd.f32 %v786, %v904
        %v921 = vadd.f32 %v787, %v905
        %v922 = vadd.f32 %v788, %v906
        %v923 = vadd.f32 %v789, %v907
        %v924 = vadd.f32 %v790, %v908
        %v925 = vadd.f32 %v791, %v909
        %v926 = vadd.f32 %v792, %v910
        %v927 = vadd.f32 %v793, %v911
        %s928 = scalar_lea.vmem [#allocation2], 24
        %v929 = vld [vmem:[%s928] sm:$0xff]
        %v930 = vld [vmem:[%s928 + $0x8] sm:$0xff]
        %v931 = vld [vmem:[%s928 + $0x10] sm:$0xff]
        %v932 = vld [vmem:[%s928 + $0x18] sm:$0xff]
        %v933 = vld [vmem:[%s928 + $0x20] sm:$0xff]
        %v934 = vld [vmem:[%s928 + $0x28] sm:$0xff]
        %v935 = vld [vmem:[%s928 + $0x30] sm:$0xff]
        %v936 = vld [vmem:[%s928 + $0x38] sm:$0xff]
        %v937 = vld [vmem:[%s928 + $0x40] sm:$0xff]
        %v938 = vld [vmem:[%s928 + $0x48] sm:$0xff]
        %v939 = vld [vmem:[%s928 + $0x50] sm:$0xff]
        %v940 = vld [vmem:[%s928 + $0x58] sm:$0xff]
        %v941 = vld [vmem:[%s928 + $0x60] sm:$0xff]
        %v942 = vld [vmem:[%s928 + $0x68] sm:$0xff]
        %v943 = vld [vmem:[%s928 + $0x70] sm:$0xff]
        %v944 = vld [vmem:[%s928 + $0x78] sm:$0xff]
        %946 = vset.pattern.permute.xlu0 0
        %947 = vperm.xlu0 %946, %v929
        %v948 = vpop.permute.xlu0 %947
        %951 = vset.pattern.permute.xlu0 0
        %952 = vperm.xlu0 %951, %v930
        %v953 = vpop.permute.xlu0 %952
        %956 = vset.pattern.permute.xlu0 0
        %957 = vperm.xlu0 %956, %v931
        %v958 = vpop.permute.xlu0 %957
        %961 = vset.pattern.permute.xlu0 0
        %962 = vperm.xlu0 %961, %v932
        %v963 = vpop.permute.xlu0 %962
        %966 = vset.pattern.permute.xlu0 0
        %967 = vperm.xlu0 %966, %v933
        %v968 = vpop.permute.xlu0 %967
        %971 = vset.pattern.permute.xlu0 0
        %972 = vperm.xlu0 %971, %v934
        %v973 = vpop.permute.xlu0 %972
        %976 = vset.pattern.permute.xlu0 0
        %977 = vperm.xlu0 %976, %v935
        %v978 = vpop.permute.xlu0 %977
        %981 = vset.pattern.permute.xlu0 0
        %982 = vperm.xlu0 %981, %v936
        %v983 = vpop.permute.xlu0 %982
        %986 = vset.pattern.permute.xlu0 0
        %987 = vperm.xlu0 %986, %v937
        %v988 = vpop.permute.xlu0 %987
        %991 = vset.pattern.permute.xlu0 0
        %992 = vperm.xlu0 %991, %v938
        %v993 = vpop.permute.xlu0 %992
        %996 = vset.pattern.permute.xlu0 0
        %997 = vperm.xlu0 %996, %v939
        %v998 = vpop.permute.xlu0 %997
        %1001 = vset.pattern.permute.xlu0 0
        %1002 = vperm.xlu0 %1001, %v940
        %v1003 = vpop.permute.xlu0 %1002
        %1006 = vset.pattern.permute.xlu0 0
        %1007 = vperm.xlu0 %1006, %v941
        %v1008 = vpop.permute.xlu0 %1007
        %1011 = vset.pattern.permute.xlu0 0
        %1012 = vperm.xlu0 %1011, %v942
        %v1013 = vpop.permute.xlu0 %1012
        %1016 = vset.pattern.permute.xlu0 0
        %1017 = vperm.xlu0 %1016, %v943
        %v1018 = vpop.permute.xlu0 %1017
        %1021 = vset.pattern.permute.xlu0 0
        %1022 = vperm.xlu0 %1021, %v944
        %v1023 = vpop.permute.xlu0 %1022
        %v1026 = vlaneseq
        %v1027 = vshrl.u32 %v1026, 7
        %v1028 = vsub.s32 0, %v1027
        %v1029 = vrot.slane %v523, %v1028
        %v1031 = vmul.f32 %v948, %v1029
        %v1032 = vmul.f32 %v953, %v1029
        %v1033 = vmul.f32 %v958, %v1029
        %v1034 = vmul.f32 %v963, %v1029
        %v1035 = vmul.f32 %v968, %v1029
        %v1036 = vmul.f32 %v973, %v1029
        %v1037 = vmul.f32 %v978, %v1029
        %v1038 = vmul.f32 %v983, %v1029
        %v1039 = vmul.f32 %v988, %v1029
        %v1040 = vmul.f32 %v993, %v1029
        %v1041 = vmul.f32 %v998, %v1029
        %v1042 = vmul.f32 %v1003, %v1029
        %v1043 = vmul.f32 %v1008, %v1029
        %v1044 = vmul.f32 %v1013, %v1029
        %v1045 = vmul.f32 %v1018, %v1029
        %v1046 = vmul.f32 %v1023, %v1029
        %v1047 = vadd.f32 %v912, %v1031
        %v1048 = vadd.f32 %v913, %v1032
        %v1049 = vadd.f32 %v914, %v1033
        %v1050 = vadd.f32 %v915, %v1034
        %v1051 = vadd.f32 %v916, %v1035
        %v1052 = vadd.f32 %v917, %v1036
        %v1053 = vadd.f32 %v918, %v1037
        %v1054 = vadd.f32 %v919, %v1038
        %v1055 = vadd.f32 %v920, %v1039
        %v1056 = vadd.f32 %v921, %v1040
        %v1057 = vadd.f32 %v922, %v1041
        %v1058 = vadd.f32 %v923, %v1042
        %v1059 = vadd.f32 %v924, %v1043
        %v1060 = vadd.f32 %v925, %v1044
        %v1061 = vadd.f32 %v926, %v1045
        %v1062 = vadd.f32 %v927, %v1046
        %s1063 = scalar_lea.vmem [#allocation2], 32
        %v1064 = vld [vmem:[%s1063] sm:$0xff]
        %v1065 = vld [vmem:[%s1063 + $0x8] sm:$0xff]
        %v1066 = vld [vmem:[%s1063 + $0x10] sm:$0xff]
        %v1067 = vld [vmem:[%s1063 + $0x18] sm:$0xff]
        %v1068 = vld [vmem:[%s1063 + $0x20] sm:$0xff]
        %v1069 = vld [vmem:[%s1063 + $0x28] sm:$0xff]
        %v1070 = vld [vmem:[%s1063 + $0x30] sm:$0xff]
        %v1071 = vld [vmem:[%s1063 + $0x38] sm:$0xff]
        %v1072 = vld [vmem:[%s1063 + $0x40] sm:$0xff]
        %v1073 = vld [vmem:[%s1063 + $0x48] sm:$0xff]
        %v1074 = vld [vmem:[%s1063 + $0x50] sm:$0xff]
        %v1075 = vld [vmem:[%s1063 + $0x58] sm:$0xff]
        %v1076 = vld [vmem:[%s1063 + $0x60] sm:$0xff]
        %v1077 = vld [vmem:[%s1063 + $0x68] sm:$0xff]
        %v1078 = vld [vmem:[%s1063 + $0x70] sm:$0xff]
        %v1079 = vld [vmem:[%s1063 + $0x78] sm:$0xff]
        %1081 = vset.pattern.permute.xlu0 0
        %1082 = vperm.xlu0 %1081, %v1064
        %v1083 = vpop.permute.xlu0 %1082
        %1086 = vset.pattern.permute.xlu0 0
        %1087 = vperm.xlu0 %1086, %v1065
        %v1088 = vpop.permute.xlu0 %1087
        %1091 = vset.pattern.permute.xlu0 0
        %1092 = vperm.xlu0 %1091, %v1066
        %v1093 = vpop.permute.xlu0 %1092
        %1096 = vset.pattern.permute.xlu0 0
        %1097 = vperm.xlu0 %1096, %v1067
        %v1098 = vpop.permute.xlu0 %1097
        %1101 = vset.pattern.permute.xlu0 0
        %1102 = vperm.xlu0 %1101, %v1068
        %v1103 = vpop.permute.xlu0 %1102
        %1106 = vset.pattern.permute.xlu0 0
        %1107 = vperm.xlu0 %1106, %v1069
        %v1108 = vpop.permute.xlu0 %1107
        %1111 = vset.pattern.permute.xlu0 0
        %1112 = vperm.xlu0 %1111, %v1070
        %v1113 = vpop.permute.xlu0 %1112
        %1116 = vset.pattern.permute.xlu0 0
        %1117 = vperm.xlu0 %1116, %v1071
        %v1118 = vpop.permute.xlu0 %1117
        %1121 = vset.pattern.permute.xlu0 0
        %1122 = vperm.xlu0 %1121, %v1072
        %v1123 = vpop.permute.xlu0 %1122
        %1126 = vset.pattern.permute.xlu0 0
        %1127 = vperm.xlu0 %1126, %v1073
        %v1128 = vpop.permute.xlu0 %1127
        %1131 = vset.pattern.permute.xlu0 0
        %1132 = vperm.xlu0 %1131, %v1074
        %v1133 = vpop.permute.xlu0 %1132
        %1136 = vset.pattern.permute.xlu0 0
        %1137 = vperm.xlu0 %1136, %v1075
        %v1138 = vpop.permute.xlu0 %1137
        %1141 = vset.pattern.permute.xlu0 0
        %1142 = vperm.xlu0 %1141, %v1076
        %v1143 = vpop.permute.xlu0 %1142
        %1146 = vset.pattern.permute.xlu0 0
        %1147 = vperm.xlu0 %1146, %v1077
        %v1148 = vpop.permute.xlu0 %1147
        %1151 = vset.pattern.permute.xlu0 0
        %1152 = vperm.xlu0 %1151, %v1078
        %v1153 = vpop.permute.xlu0 %1152
        %1156 = vset.pattern.permute.xlu0 0
        %1157 = vperm.xlu0 %1156, %v1079
        %v1158 = vpop.permute.xlu0 %1157
        %v1161 = vlaneseq
        %v1162 = vshrl.u32 %v1161, 7
        %v1163 = vsub.s32 0, %v1162
        %v1164 = vrot.slane %v524, %v1163
        %v1166 = vmul.f32 %v1083, %v1164
        %v1167 = vmul.f32 %v1088, %v1164
        %v1168 = vmul.f32 %v1093, %v1164
        %v1169 = vmul.f32 %v1098, %v1164
        %v1170 = vmul.f32 %v1103, %v1164
        %v1171 = vmul.f32 %v1108, %v1164
        %v1172 = vmul.f32 %v1113, %v1164
        %v1173 = vmul.f32 %v1118, %v1164
        %v1174 = vmul.f32 %v1123, %v1164
        %v1175 = vmul.f32 %v1128, %v1164
        %v1176 = vmul.f32 %v1133, %v1164
        %v1177 = vmul.f32 %v1138, %v1164
        %v1178 = vmul.f32 %v1143, %v1164
        %v1179 = vmul.f32 %v1148, %v1164
        %v1180 = vmul.f32 %v1153, %v1164
        %v1181 = vmul.f32 %v1158, %v1164
        %v1182 = vadd.f32 %v1047, %v1166
        %v1183 = vadd.f32 %v1048, %v1167
        %v1184 = vadd.f32 %v1049, %v1168
        %v1185 = vadd.f32 %v1050, %v1169
        %v1186 = vadd.f32 %v1051, %v1170
        %v1187 = vadd.f32 %v1052, %v1171
        %v1188 = vadd.f32 %v1053, %v1172
        %v1189 = vadd.f32 %v1054, %v1173
        %v1190 = vadd.f32 %v1055, %v1174
        %v1191 = vadd.f32 %v1056, %v1175
        %v1192 = vadd.f32 %v1057, %v1176
        %v1193 = vadd.f32 %v1058, %v1177
        %v1194 = vadd.f32 %v1059, %v1178
        %v1195 = vadd.f32 %v1060, %v1179
        %v1196 = vadd.f32 %v1061, %v1180
        %v1197 = vadd.f32 %v1062, %v1181
        %v1198 = vld [vmem:[%s2] sm:$0x1]
        %v1200 = vlaneseq
        %v1201 = vshrl.u32 %v1200, 7
        %v1202 = vsub.s32 0, %v1201
        %v1203 = vrot.slane %v1198, %v1202
        %v1205 = vadd.f32 %v1182, %v1203
        %v1206 = vadd.f32 %v1183, %v1203
        %v1207 = vadd.f32 %v1184, %v1203
        %v1208 = vadd.f32 %v1185, %v1203
        %v1209 = vadd.f32 %v1186, %v1203
        %v1210 = vadd.f32 %v1187, %v1203
        %v1211 = vadd.f32 %v1188, %v1203
        %v1212 = vadd.f32 %v1189, %v1203
        %v1213 = vadd.f32 %v1190, %v1203
        %v1214 = vadd.f32 %v1191, %v1203
        %v1215 = vadd.f32 %v1192, %v1203
        %v1216 = vadd.f32 %v1193, %v1203
        %v1217 = vadd.f32 %v1194, %v1203
        %v1218 = vadd.f32 %v1195, %v1203
        %v1219 = vadd.f32 %v1196, %v1203
        %v1220 = vadd.f32 %v1197, %v1203
        %v1221 = vmax.f32 %v1205, %v1206
        %v1222 = vmax.f32 %v1207, %v1208
        %v1223 = vmax.f32 %v1209, %v1210
        %v1224 = vmax.f32 %v1211, %v1212
        %v1225 = vmax.f32 %v1213, %v1214
        %v1226 = vmax.f32 %v1215, %v1216
        %v1227 = vmax.f32 %v1217, %v1218
        %v1228 = vmax.f32 %v1219, %v1220
        %v1229 = vmul.f32 %v1221, 0.2
        %v1230 = vmul.f32 %v1222, 0.2
        %v1231 = vmul.f32 %v1223, 0.2
        %v1232 = vmul.f32 %v1224, 0.2
        %v1233 = vmul.f32 %v1225, 0.2
        %v1234 = vmul.f32 %v1226, 0.2
        %v1235 = vmul.f32 %v1227, 0.2
        %v1236 = vmul.f32 %v1228, 0.2
        %v1237 = vmax.f32 %v1221, %v1229
        %v1238 = vmax.f32 %v1222, %v1230
        %v1239 = vmax.f32 %v1223, %v1231
        %v1240 = vmax.f32 %v1224, %v1232
        %v1241 = vmax.f32 %v1225, %v1233
        %v1242 = vmax.f32 %v1226, %v1234
        %v1243 = vmax.f32 %v1227, %v1235
        %v1244 = vmax.f32 %v1228, %v1236
        %vm1245 = vcmask 64512
        %1246 = vst.msk [vmem:[#allocation3] sm:$0xff] %vm1245, 0.0
        %1247 = vst.msk [vmem:[#allocation3 + $0x8] sm:$0xff] %vm1245, 0.0
        %s1248 = scalar_lea.vmem [#allocation3], 80
        %1249 = vst.msk [vmem:[%s1248] sm:$0xff] %vm1245, 0.0
        %1250 = vst.msk [vmem:[%s1248 + $0x8] sm:$0xff] %vm1245, 0.0
        %s1251 = scalar_lea.vmem [#allocation3], 16
        %1252 = vst.msk [vmem:[%s1251] sm:$0xff] %vm1245, %v1237
        %1253 = vst.msk [vmem:[%s1251 + $0x8] sm:$0xff] %vm1245, %v1238
        %1254 = vst.msk [vmem:[%s1251 + $0x10] sm:$0xff] %vm1245, %v1239
        %1255 = vst.msk [vmem:[%s1251 + $0x18] sm:$0xff] %vm1245, %v1240
        %1256 = vst.msk [vmem:[%s1251 + $0x20] sm:$0xff] %vm1245, %v1241
        %1257 = vst.msk [vmem:[%s1251 + $0x28] sm:$0xff] %vm1245, %v1242
        %1258 = vst.msk [vmem:[%s1251 + $0x30] sm:$0xff] %vm1245, %v1243
        %1259 = vst.msk [vmem:[%s1251 + $0x38] sm:$0xff] %vm1245, %v1244
        %v1260 = vld [vmem:[%s3] sm:$0xff]
        %v1261 = vld [vmem:[%s3 + $0x8] sm:$0xff]
        %v1262 = vld [vmem:[%s3 + $0x10] sm:$0xff]
        %v1263 = vld [vmem:[%s3 + $0x18] sm:$0xff]
        %v1264 = vld [vmem:[%s3 + $0x20] sm:$0xff]
        %v1265 = vld [vmem:[#allocation3] sm:$0xff]
        %v1266 = vld [vmem:[#allocation3 + $0x8] sm:$0xff]
        %v1267 = vld [vmem:[#allocation3 + $0x10] sm:$0xff]
        %v1268 = vld [vmem:[#allocation3 + $0x18] sm:$0xff]
        %v1269 = vld [vmem:[#allocation3 + $0x20] sm:$0xff]
        %v1270 = vld [vmem:[#allocation3 + $0x28] sm:$0xff]
        %v1271 = vld [vmem:[#allocation3 + $0x30] sm:$0xff]
        %v1272 = vld [vmem:[#allocation3 + $0x38] sm:$0xff]
        %s1273 = scalar_lea.vmem [#allocation3], 8
        %v1274 = vld [vmem:[%s1273] sm:$0xff]
        %v1275 = vld [vmem:[%s1273 + $0x8] sm:$0xff]
        %v1276 = vld [vmem:[%s1273 + $0x10] sm:$0xff]
        %v1277 = vld [vmem:[%s1273 + $0x18] sm:$0xff]
        %v1278 = vld [vmem:[%s1273 + $0x20] sm:$0xff]
        %v1279 = vld [vmem:[%s1273 + $0x28] sm:$0xff]
        %v1280 = vld [vmem:[%s1273 + $0x30] sm:$0xff]
        %v1281 = vld [vmem:[%s1273 + $0x38] sm:$0xff]
        %v1283 = vsel %vm1245, %v1274, 0
        %v1286 = vsel %vm1245, %v1275, 0
        %v1289 = vsel %vm1245, %v1276, 0
        %v1292 = vsel %vm1245, %v1277, 0
        %v1295 = vsel %vm1245, %v1278, 0
        %v1298 = vsel %vm1245, %v1279, 0
        %v1301 = vsel %vm1245, %v1280, 0
        %v1304 = vsel %vm1245, %v1281, 0
        %1306 = vmatprep.subr.mxu0 0.0
        %1307 = vmatpush1.msra.mxu0 %v1261
        %1308 = vmatprep.subr.mxu0 0.0
        %1309 = vmatpush1.msra.mxu0 0.0
        %1310 = vmatprep.subr.mxu0 0.0
        %1311 = vmatpush1.msra.mxu0 0.0
        %1312 = vmatprep.subr.mxu0 0.0
        %1313 = vmatpush1.msra.mxu0 0.0
        %1314 = vmatprep.subr.mxu0 0.0
        %1315 = vmatpush1.msra.mxu0 0.0
        %1316 = vmatprep.subr.mxu0 0.0
        %1317 = vmatpush1.msra.mxu0 0.0
        %1318 = vmatprep.subr.mxu0 0.0
        %1319 = vmatpush1.msra.mxu0 0.0
        %1320 = vmatprep.subr.mxu0 0.0
        %1321 = vmatpush1.msra.mxu0 0.0
        %1322 = vmatprep.subr.mxu0 0.0
        %1323 = vmatpush1.msra.mxu0 0.0
        %1324 = vmatprep.subr.mxu0 0.0
        %1325 = vmatpush1.msra.mxu0 0.0
        %1326 = vmatprep.subr.mxu0 0.0
        %1327 = vmatpush1.msra.mxu0 0.0
        %1328 = vmatprep.subr.mxu0 0.0
        %1329 = vmatpush1.msra.mxu0 0.0
        %1330 = vmatprep.subr.mxu0 0.0
        %1331 = vmatpush1.msra.mxu0 0.0
        %1332 = vmatprep.subr.mxu0 0.0
        %1333 = vmatpush1.msra.mxu0 0.0
        %1334 = vmatprep.subr.mxu0 0.0
        %1335 = vmatpush1.msra.mxu0 0.0
        %1336 = vmatprep.subr.mxu0 0.0
        %1337 = vmatpush1.msra.mxu0 0.0
        %1338 = vmatprep.subr.mxu0 0.0
        %1339 = vmatpush1.msra.mxu0 0.0
        %1340 = vmatprep.subr.mxu0 0.0
        %1341 = vmatpush1.msra.mxu0 0.0
        %1342 = vmatprep.subr.mxu0 0.0
        %1343 = vmatpush1.msra.mxu0 0.0
        %1344 = vmatprep.subr.mxu0 0.0
        %1345 = vmatpush1.msra.mxu0 0.0
        %1346 = vmatprep.subr.mxu0 0.0
        %1347 = vmatpush1.msra.mxu0 0.0
        %1348 = vmatprep.subr.mxu0 0.0
        %1349 = vmatpush1.msra.mxu0 0.0
        %1350 = vmatprep.subr.mxu0 0.0
        %1351 = vmatpush1.msra.mxu0 0.0
        %1352 = vmatprep.subr.mxu0 0.0
        %1353 = vmatpush1.msra.mxu0 0.0
        %1354 = vmatprep.subr.mxu0 0.0
        %1355 = vmatpush1.msra.mxu0 0.0
        %1356 = vmatprep.subr.mxu0 0.0
        %1357 = vmatpush1.msra.mxu0 0.0
        %1358 = vmatprep.subr.mxu0 0.0
        %1359 = vmatpush1.msra.mxu0 0.0
        %1360 = vmatprep.subr.mxu0 0.0
        %1361 = vmatpush1.msra.mxu0 0.0
        %1362 = vmatprep.subr.mxu0 0.0
        %1363 = vmatpush1.msra.mxu0 0.0
        %1364 = vmatprep.subr.mxu0 0.0
        %1365 = vmatpush1.msra.mxu0 0.0
        %1366 = vmatprep.subr.mxu0 0.0
        %1367 = vmatpush1.msra.mxu0 0.0
        %1368 = vmatprep.subr.mxu0 0.0
        %1369 = vmatpush1.msra.mxu0 0.0
        %1370 = vmatprep.mubr.f32.mxu0 0.0
        %1371 = vmatmul.mubr.f32.gmra.mrb[0].mxu0 %v1283
        %v1372 = vpop.f32.mrb[0].mxu0
        %v1373 = vadd.f32 0.0, %v1372
        %v1374 = vpop.f32.mrb[0].mxu0
        %1375 = vmatprep.mubr.f32.mxu0 0.0
        %1376 = vmatmul.mubr.f32.gmra.mrb[0].mxu0 %v1286
        %v1377 = vpop.f32.mrb[0].mxu0
        %v1378 = vadd.f32 0.0, %v1377
        %v1379 = vpop.f32.mrb[0].mxu0
        %1380 = vmatprep.mubr.f32.mxu0 0.0
        %1381 = vmatmul.mubr.f32.gmra.mrb[0].mxu0 %v1289
        %v1382 = vpop.f32.mrb[0].mxu0
        %v1383 = vadd.f32 0.0, %v1382
        %v1384 = vpop.f32.mrb[0].mxu0
        %1385 = vmatprep.mubr.f32.mxu0 0.0
        %1386 = vmatmul.mubr.f32.gmra.mrb[0].mxu0 %v1292
        %v1387 = vpop.f32.mrb[0].mxu0
        %v1388 = vadd.f32 0.0, %v1387
        %v1389 = vpop.f32.mrb[0].mxu0
        %1390 = vmatprep.mubr.f32.mxu0 0.0
        %1391 = vmatmul.mubr.f32.gmra.mrb[0].mxu0 %v1295
        %v1392 = vpop.f32.mrb[0].mxu0
        %v1393 = vadd.f32 0.0, %v1392
        %v1394 = vpop.f32.mrb[0].mxu0
        %1395 = vmatprep.mubr.f32.mxu0 0.0
        %1396 = vmatmul.mubr.f32.gmra.mrb[0].mxu0 %v1298
        %v1397 = vpop.f32.mrb[0].mxu0
        %v1398 = vadd.f32 0.0, %v1397
        %v1399 = vpop.f32.mrb[0].mxu0
        %1400 = vmatprep.mubr.f32.mxu0 0.0
        %1401 = vmatmul.mubr.f32.gmra.mrb[0].mxu0 %v1301
        %v1402 = vpop.f32.mrb[0].mxu0
        %v1403 = vadd.f32 0.0, %v1402
        %v1404 = vpop.f32.mrb[0].mxu0
        %1405 = vmatprep.mubr.f32.mxu0 0.0
        %1406 = vmatmul.mubr.f32.gmra.mrb[0].mxu0 %v1304
        %v1407 = vpop.f32.mrb[0].mxu0
        %v1408 = vadd.f32 0.0, %v1407
        %v1409 = vpop.f32.mrb[0].mxu0
        %1410 = vdwg.mxu0
        %v1412 = vsel %vm1245, %v1265, 0
        %v1415 = vsel %vm1245, %v1266, 0
        %v1418 = vsel %vm1245, %v1267, 0
        %v1421 = vsel %vm1245, %v1268, 0
        %v1424 = vsel %vm1245, %v1269, 0
        %v1427 = vsel %vm1245, %v1270, 0
        %v1430 = vsel %vm1245, %v1271, 0
        %v1433 = vsel %vm1245, %v1272, 0
        %1435 = vmatprep.subr.mxu0 0.0
        %1436 = vmatpush1.msra.mxu0 %v1260
        %1437 = vmatprep.subr.mxu0 0.0
        %1438 = vmatpush1.msra.mxu0 0.0
        %1439 = vmatprep.subr.mxu0 0.0
        %1440 = vmatpush1.msra.mxu0 0.0
        %1441 = vmatprep.subr.mxu0 0.0
        %1442 = vmatpush1.msra.mxu0 0.0
        %1443 = vmatprep.subr.mxu0 0.0
        %1444 = vmatpush1.msra.mxu0 0.0
        %1445 = vmatprep.subr.mxu0 0.0
        %1446 = vmatpush1.msra.mxu0 0.0
        %1447 = vmatprep.subr.mxu0 0.0
        %1448 = vmatpush1.msra.mxu0 0.0
        %1449 = vmatprep.subr.mxu0 0.0
        %1450 = vmatpush1.msra.mxu0 0.0
        %1451 = vmatprep.subr.mxu0 0.0
        %1452 = vmatpush1.msra.mxu0 0.0
        %1453 = vmatprep.subr.mxu0 0.0
        %1454 = vmatpush1.msra.mxu0 0.0
        %1455 = vmatprep.subr.mxu0 0.0
        %1456 = vmatpush1.msra.mxu0 0.0
        %1457 = vmatprep.subr.mxu0 0.0
        %1458 = vmatpush1.msra.mxu0 0.0
        %1459 = vmatprep.subr.mxu0 0.0
        %1460 = vmatpush1.msra.mxu0 0.0
        %1461 = vmatprep.subr.mxu0 0.0
        %1462 = vmatpush1.msra.mxu0 0.0
        %1463 = vmatprep.subr.mxu0 0.0
        %1464 = vmatpush1.msra.mxu0 0.0
        %1465 = vmatprep.subr.mxu0 0.0
        %1466 = vmatpush1.msra.mxu0 0.0
        %1467 = vmatprep.subr.mxu0 0.0
        %1468 = vmatpush1.msra.mxu0 0.0
        %1469 = vmatprep.subr.mxu0 0.0
        %1470 = vmatpush1.msra.mxu0 0.0
        %1471 = vmatprep.subr.mxu0 0.0
        %1472 = vmatpush1.msra.mxu0 0.0
        %1473 = vmatprep.subr.mxu0 0.0
        %1474 = vmatpush1.msra.mxu0 0.0
        %1475 = vmatprep.subr.mxu0 0.0
        %1476 = vmatpush1.msra.mxu0 0.0
        %1477 = vmatprep.subr.mxu0 0.0
        %1478 = vmatpush1.msra.mxu0 0.0
        %1479 = vmatprep.subr.mxu0 0.0
        %1480 = vmatpush1.msra.mxu0 0.0
        %1481 = vmatprep.subr.mxu0 0.0
        %1482 = vmatpush1.msra.mxu0 0.0
        %1483 = vmatprep.subr.mxu0 0.0
        %1484 = vmatpush1.msra.mxu0 0.0
        %1485 = vmatprep.subr.mxu0 0.0
        %1486 = vmatpush1.msra.mxu0 0.0
        %1487 = vmatprep.subr.mxu0 0.0
        %1488 = vmatpush1.msra.mxu0 0.0
        %1489 = vmatprep.subr.mxu0 0.0
        %1490 = vmatpush1.msra.mxu0 0.0
        %1491 = vmatprep.subr.mxu0 0.0
        %1492 = vmatpush1.msra.mxu0 0.0
        %1493 = vmatprep.subr.mxu0 0.0
        %1494 = vmatpush1.msra.mxu0 0.0
        %1495 = vmatprep.subr.mxu0 0.0
        %1496 = vmatpush1.msra.mxu0 0.0
        %1497 = vmatprep.subr.mxu0 0.0
        %1498 = vmatpush1.msra.mxu0 0.0
        %1499 = vmatprep.mubr.f32.mxu0 0.0
        %1500 = vmatmul.mubr.f32.gmra.mrb[0].mxu0 %v1412
        %v1501 = vpop.f32.mrb[0].mxu0
        %v1502 = vadd.f32 %v1373, %v1501
        %v1503 = vpop.f32.mrb[0].mxu0
        %1504 = vmatprep.mubr.f32.mxu0 0.0
        %1505 = vmatmul.mubr.f32.gmra.mrb[0].mxu0 %v1415
        %v1506 = vpop.f32.mrb[0].mxu0
        %v1507 = vadd.f32 %v1378, %v1506
        %v1508 = vpop.f32.mrb[0].mxu0
        %1509 = vmatprep.mubr.f32.mxu0 0.0
        %1510 = vmatmul.mubr.f32.gmra.mrb[0].mxu0 %v1418
        %v1511 = vpop.f32.mrb[0].mxu0
        %v1512 = vadd.f32 %v1383, %v1511
        %v1513 = vpop.f32.mrb[0].mxu0
        %1514 = vmatprep.mubr.f32.mxu0 0.0
        %1515 = vmatmul.mubr.f32.gmra.mrb[0].mxu0 %v1421
        %v1516 = vpop.f32.mrb[0].mxu0
        %v1517 = vadd.f32 %v1388, %v1516
        %v1518 = vpop.f32.mrb[0].mxu0
        %1519 = vmatprep.mubr.f32.mxu0 0.0
        %1520 = vmatmul.mubr.f32.gmra.mrb[0].mxu0 %v1424
        %v1521 = vpop.f32.mrb[0].mxu0
        %v1522 = vadd.f32 %v1393, %v1521
        %v1523 = vpop.f32.mrb[0].mxu0
        %1524 = vmatprep.mubr.f32.mxu0 0.0
        %1525 = vmatmul.mubr.f32.gmra.mrb[0].mxu0 %v1427
        %v1526 = vpop.f32.mrb[0].mxu0
        %v1527 = vadd.f32 %v1398, %v1526
        %v1528 = vpop.f32.mrb[0].mxu0
        %1529 = vmatprep.mubr.f32.mxu0 0.0
        %1530 = vmatmul.mubr.f32.gmra.mrb[0].mxu0 %v1430
        %v1531 = vpop.f32.mrb[0].mxu0
        %v1532 = vadd.f32 %v1403, %v1531
        %v1533 = vpop.f32.mrb[0].mxu0
        %1534 = vmatprep.mubr.f32.mxu0 0.0
        %1535 = vmatmul.mubr.f32.gmra.mrb[0].mxu0 %v1433
        %v1536 = vpop.f32.mrb[0].mxu0
        %v1537 = vadd.f32 %v1408, %v1536
        %v1538 = vpop.f32.mrb[0].mxu0
        %1539 = vdwg.mxu0
        %v1540 = vld [vmem:[%s1251] sm:$0xff]
        %v1541 = vld [vmem:[%s1251 + $0x8] sm:$0xff]
        %v1542 = vld [vmem:[%s1251 + $0x10] sm:$0xff]
        %v1543 = vld [vmem:[%s1251 + $0x18] sm:$0xff]
        %v1544 = vld [vmem:[%s1251 + $0x20] sm:$0xff]
        %v1545 = vld [vmem:[%s1251 + $0x28] sm:$0xff]
        %v1546 = vld [vmem:[%s1251 + $0x30] sm:$0xff]
        %v1547 = vld [vmem:[%s1251 + $0x38] sm:$0xff]
        %v1549 = vsel %vm1245, %v1540, 0
        %v1552 = vsel %vm1245, %v1541, 0
        %v1555 = vsel %vm1245, %v1542, 0
        %v1558 = vsel %vm1245, %v1543, 0
        %v1561 = vsel %vm1245, %v1544, 0
        %v1564 = vsel %vm1245, %v1545, 0
        %v1567 = vsel %vm1245, %v1546, 0
        %v1570 = vsel %vm1245, %v1547, 0
        %1572 = vmatprep.subr.mxu0 0.0
        %1573 = vmatpush1.msra.mxu0 %v1262
        %1574 = vmatprep.subr.mxu0 0.0
        %1575 = vmatpush1.msra.mxu0 0.0
        %1576 = vmatprep.subr.mxu0 0.0
        %1577 = vmatpush1.msra.mxu0 0.0
        %1578 = vmatprep.subr.mxu0 0.0
        %1579 = vmatpush1.msra.mxu0 0.0
        %1580 = vmatprep.subr.mxu0 0.0
        %1581 = vmatpush1.msra.mxu0 0.0
        %1582 = vmatprep.subr.mxu0 0.0
        %1583 = vmatpush1.msra.mxu0 0.0
        %1584 = vmatprep.subr.mxu0 0.0
        %1585 = vmatpush1.msra.mxu0 0.0
        %1586 = vmatprep.subr.mxu0 0.0
        %1587 = vmatpush1.msra.mxu0 0.0
        %1588 = vmatprep.subr.mxu0 0.0
        %1589 = vmatpush1.msra.mxu0 0.0
        %1590 = vmatprep.subr.mxu0 0.0
        %1591 = vmatpush1.msra.mxu0 0.0
        %1592 = vmatprep.subr.mxu0 0.0
        %1593 = vmatpush1.msra.mxu0 0.0
        %1594 = vmatprep.subr.mxu0 0.0
        %1595 = vmatpush1.msra.mxu0 0.0
        %1596 = vmatprep.subr.mxu0 0.0
        %1597 = vmatpush1.msra.mxu0 0.0
        %1598 = vmatprep.subr.mxu0 0.0
        %1599 = vmatpush1.msra.mxu0 0.0
        %1600 = vmatprep.subr.mxu0 0.0
        %1601 = vmatpush1.msra.mxu0 0.0
        %1602 = vmatprep.subr.mxu0 0.0
        %1603 = vmatpush1.msra.mxu0 0.0
        %1604 = vmatprep.subr.mxu0 0.0
        %1605 = vmatpush1.msra.mxu0 0.0
        %1606 = vmatprep.subr.mxu0 0.0
        %1607 = vmatpush1.msra.mxu0 0.0
        %1608 = vmatprep.subr.mxu0 0.0
        %1609 = vmatpush1.msra.mxu0 0.0
        %1610 = vmatprep.subr.mxu0 0.0
        %1611 = vmatpush1.msra.mxu0 0.0
        %1612 = vmatprep.subr.mxu0 0.0
        %1613 = vmatpush1.msra.mxu0 0.0
        %1614 = vmatprep.subr.mxu0 0.0
        %1615 = vmatpush1.msra.mxu0 0.0
        %1616 = vmatprep.subr.mxu0 0.0
        %1617 = vmatpush1.msra.mxu0 0.0
        %1618 = vmatprep.subr.mxu0 0.0
        %1619 = vmatpush1.msra.mxu0 0.0
        %1620 = vmatprep.subr.mxu0 0.0
        %1621 = vmatpush1.msra.mxu0 0.0
        %1622 = vmatprep.subr.mxu0 0.0
        %1623 = vmatpush1.msra.mxu0 0.0
        %1624 = vmatprep.subr.mxu0 0.0
        %1625 = vmatpush1.msra.mxu0 0.0
        %1626 = vmatprep.subr.mxu0 0.0
        %1627 = vmatpush1.msra.mxu0 0.0
        %1628 = vmatprep.subr.mxu0 0.0
        %1629 = vmatpush1.msra.mxu0 0.0
        %1630 = vmatprep.subr.mxu0 0.0
        %1631 = vmatpush1.msra.mxu0 0.0
        %1632 = vmatprep.subr.mxu0 0.0
        %1633 = vmatpush1.msra.mxu0 0.0
        %1634 = vmatprep.subr.mxu0 0.0
        %1635 = vmatpush1.msra.mxu0 0.0
        %1636 = vmatprep.mubr.f32.mxu0 0.0
        %1637 = vmatmul.mubr.f32.gmra.mrb[0].mxu0 %v1549
        %v1638 = vpop.f32.mrb[0].mxu0
        %v1639 = vadd.f32 0.0, %v1638
        %v1640 = vpop.f32.mrb[0].mxu0
        %1641 = vmatprep.mubr.f32.mxu0 0.0
        %1642 = vmatmul.mubr.f32.gmra.mrb[0].mxu0 %v1552
        %v1643 = vpop.f32.mrb[0].mxu0
        %v1644 = vadd.f32 0.0, %v1643
        %v1645 = vpop.f32.mrb[0].mxu0
        %1646 = vmatprep.mubr.f32.mxu0 0.0
        %1647 = vmatmul.mubr.f32.gmra.mrb[0].mxu0 %v1555
        %v1648 = vpop.f32.mrb[0].mxu0
        %v1649 = vadd.f32 0.0, %v1648
        %v1650 = vpop.f32.mrb[0].mxu0
        %1651 = vmatprep.mubr.f32.mxu0 0.0
        %1652 = vmatmul.mubr.f32.gmra.mrb[0].mxu0 %v1558
        %v1653 = vpop.f32.mrb[0].mxu0
        %v1654 = vadd.f32 0.0, %v1653
        %v1655 = vpop.f32.mrb[0].mxu0
        %1656 = vmatprep.mubr.f32.mxu0 0.0
        %1657 = vmatmul.mubr.f32.gmra.mrb[0].mxu0 %v1561
        %v1658 = vpop.f32.mrb[0].mxu0
        %v1659 = vadd.f32 0.0, %v1658
        %v1660 = vpop.f32.mrb[0].mxu0
        %1661 = vmatprep.mubr.f32.mxu0 0.0
        %1662 = vmatmul.mubr.f32.gmra.mrb[0].mxu0 %v1564
        %v1663 = vpop.f32.mrb[0].mxu0
        %v1664 = vadd.f32 0.0, %v1663
        %v1665 = vpop.f32.mrb[0].mxu0
        %1666 = vmatprep.mubr.f32.mxu0 0.0
        %1667 = vmatmul.mubr.f32.gmra.mrb[0].mxu0 %v1567
        %v1668 = vpop.f32.mrb[0].mxu0
        %v1669 = vadd.f32 0.0, %v1668
        %v1670 = vpop.f32.mrb[0].mxu0
        %1671 = vmatprep.mubr.f32.mxu0 0.0
        %1672 = vmatmul.mubr.f32.gmra.mrb[0].mxu0 %v1570
        %v1673 = vpop.f32.mrb[0].mxu0
        %v1674 = vadd.f32 0.0, %v1673
        %v1675 = vpop.f32.mrb[0].mxu0
        %1676 = vdwg.mxu0
        %v1677 = vadd.f32 %v1502, %v1639
        %v1678 = vadd.f32 %v1507, %v1644
        %v1679 = vadd.f32 %v1512, %v1649
        %v1680 = vadd.f32 %v1517, %v1654
        %v1681 = vadd.f32 %v1522, %v1659
        %v1682 = vadd.f32 %v1527, %v1664
        %v1683 = vadd.f32 %v1532, %v1669
        %v1684 = vadd.f32 %v1537, %v1674
        %s1685 = scalar_lea.vmem [#allocation3], 24
        %v1686 = vld [vmem:[%s1685] sm:$0xff]
        %v1687 = vld [vmem:[%s1685 + $0x8] sm:$0xff]
        %v1688 = vld [vmem:[%s1685 + $0x10] sm:$0xff]
        %v1689 = vld [vmem:[%s1685 + $0x18] sm:$0xff]
        %v1690 = vld [vmem:[%s1685 + $0x20] sm:$0xff]
        %v1691 = vld [vmem:[%s1685 + $0x28] sm:$0xff]
        %v1692 = vld [vmem:[%s1685 + $0x30] sm:$0xff]
        %v1693 = vld [vmem:[%s1685 + $0x38] sm:$0xff]
        %v1695 = vsel %vm1245, %v1686, 0
        %v1698 = vsel %vm1245, %v1687, 0
        %v1701 = vsel %vm1245, %v1688, 0
        %v1704 = vsel %vm1245, %v1689, 0
        %v1707 = vsel %vm1245, %v1690, 0
        %v1710 = vsel %vm1245, %v1691, 0
        %v1713 = vsel %vm1245, %v1692, 0
        %v1716 = vsel %vm1245, %v1693, 0
        %1718 = vmatprep.subr.mxu0 0.0
        %1719 = vmatpush1.msra.mxu0 %v1263
        %1720 = vmatprep.subr.mxu0 0.0
        %1721 = vmatpush1.msra.mxu0 0.0
        %1722 = vmatprep.subr.mxu0 0.0
        %1723 = vmatpush1.msra.mxu0 0.0
        %1724 = vmatprep.subr.mxu0 0.0
        %1725 = vmatpush1.msra.mxu0 0.0
        %1726 = vmatprep.subr.mxu0 0.0
        %1727 = vmatpush1.msra.mxu0 0.0
        %1728 = vmatprep.subr.mxu0 0.0
        %1729 = vmatpush1.msra.mxu0 0.0
        %1730 = vmatprep.subr.mxu0 0.0
        %1731 = vmatpush1.msra.mxu0 0.0
        %1732 = vmatprep.subr.mxu0 0.0
        %1733 = vmatpush1.msra.mxu0 0.0
        %1734 = vmatprep.subr.mxu0 0.0
        %1735 = vmatpush1.msra.mxu0 0.0
        %1736 = vmatprep.subr.mxu0 0.0
        %1737 = vmatpush1.msra.mxu0 0.0
        %1738 = vmatprep.subr.mxu0 0.0
        %1739 = vmatpush1.msra.mxu0 0.0
        %1740 = vmatprep.subr.mxu0 0.0
        %1741 = vmatpush1.msra.mxu0 0.0
        %1742 = vmatprep.subr.mxu0 0.0
        %1743 = vmatpush1.msra.mxu0 0.0
        %1744 = vmatprep.subr.mxu0 0.0
        %1745 = vmatpush1.msra.mxu0 0.0
        %1746 = vmatprep.subr.mxu0 0.0
        %1747 = vmatpush1.msra.mxu0 0.0
        %1748 = vmatprep.subr.mxu0 0.0
        %1749 = vmatpush1.msra.mxu0 0.0
        %1750 = vmatprep.subr.mxu0 0.0
        %1751 = vmatpush1.msra.mxu0 0.0
        %1752 = vmatprep.subr.mxu0 0.0
        %1753 = vmatpush1.msra.mxu0 0.0
        %1754 = vmatprep.subr.mxu0 0.0
        %1755 = vmatpush1.msra.mxu0 0.0
        %1756 = vmatprep.subr.mxu0 0.0
        %1757 = vmatpush1.msra.mxu0 0.0
        %1758 = vmatprep.subr.mxu0 0.0
        %1759 = vmatpush1.msra.mxu0 0.0
        %1760 = vmatprep.subr.mxu0 0.0
        %1761 = vmatpush1.msra.mxu0 0.0
        %1762 = vmatprep.subr.mxu0 0.0
        %1763 = vmatpush1.msra.mxu0 0.0
        %1764 = vmatprep.subr.mxu0 0.0
        %1765 = vmatpush1.msra.mxu0 0.0
        %1766 = vmatprep.subr.mxu0 0.0
        %1767 = vmatpush1.msra.mxu0 0.0
        %1768 = vmatprep.subr.mxu0 0.0
        %1769 = vmatpush1.msra.mxu0 0.0
        %1770 = vmatprep.subr.mxu0 0.0
        %1771 = vmatpush1.msra.mxu0 0.0
        %1772 = vmatprep.subr.mxu0 0.0
        %1773 = vmatpush1.msra.mxu0 0.0
        %1774 = vmatprep.subr.mxu0 0.0
        %1775 = vmatpush1.msra.mxu0 0.0
        %1776 = vmatprep.subr.mxu0 0.0
        %1777 = vmatpush1.msra.mxu0 0.0
        %1778 = vmatprep.subr.mxu0 0.0
        %1779 = vmatpush1.msra.mxu0 0.0
        %1780 = vmatprep.subr.mxu0 0.0
        %1781 = vmatpush1.msra.mxu0 0.0
        %1782 = vmatprep.mubr.f32.mxu0 0.0
        %1783 = vmatmul.mubr.f32.gmra.mrb[0].mxu0 %v1695
        %v1784 = vpop.f32.mrb[0].mxu0
        %v1785 = vadd.f32 0.0, %v1784
        %v1786 = vpop.f32.mrb[0].mxu0
        %1787 = vmatprep.mubr.f32.mxu0 0.0
        %1788 = vmatmul.mubr.f32.gmra.mrb[0].mxu0 %v1698
        %v1789 = vpop.f32.mrb[0].mxu0
        %v1790 = vadd.f32 0.0, %v1789
        %v1791 = vpop.f32.mrb[0].mxu0
        %1792 = vmatprep.mubr.f32.mxu0 0.0
        %1793 = vmatmul.mubr.f32.gmra.mrb[0].mxu0 %v1701
        %v1794 = vpop.f32.mrb[0].mxu0
        %v1795 = vadd.f32 0.0, %v1794
        %v1796 = vpop.f32.mrb[0].mxu0
        %1797 = vmatprep.mubr.f32.mxu0 0.0
        %1798 = vmatmul.mubr.f32.gmra.mrb[0].mxu0 %v1704
        %v1799 = vpop.f32.mrb[0].mxu0
        %v1800 = vadd.f32 0.0, %v1799
        %v1801 = vpop.f32.mrb[0].mxu0
        %1802 = vmatprep.mubr.f32.mxu0 0.0
        %1803 = vmatmul.mubr.f32.gmra.mrb[0].mxu0 %v1707
        %v1804 = vpop.f32.mrb[0].mxu0
        %v1805 = vadd.f32 0.0, %v1804
        %v1806 = vpop.f32.mrb[0].mxu0
        %1807 = vmatprep.mubr.f32.mxu0 0.0
        %1808 = vmatmul.mubr.f32.gmra.mrb[0].mxu0 %v1710
        %v1809 = vpop.f32.mrb[0].mxu0
        %v1810 = vadd.f32 0.0, %v1809
        %v1811 = vpop.f32.mrb[0].mxu0
        %1812 = vmatprep.mubr.f32.mxu0 0.0
        %1813 = vmatmul.mubr.f32.gmra.mrb[0].mxu0 %v1713
        %v1814 = vpop.f32.mrb[0].mxu0
        %v1815 = vadd.f32 0.0, %v1814
        %v1816 = vpop.f32.mrb[0].mxu0
        %1817 = vmatprep.mubr.f32.mxu0 0.0
        %1818 = vmatmul.mubr.f32.gmra.mrb[0].mxu0 %v1716
        %v1819 = vpop.f32.mrb[0].mxu0
        %v1820 = vadd.f32 0.0, %v1819
        %v1821 = vpop.f32.mrb[0].mxu0
        %1822 = vdwg.mxu0
        %v1823 = vadd.f32 %v1677, %v1785
        %v1824 = vadd.f32 %v1678, %v1790
        %v1825 = vadd.f32 %v1679, %v1795
        %v1826 = vadd.f32 %v1680, %v1800
        %v1827 = vadd.f32 %v1681, %v1805
        %v1828 = vadd.f32 %v1682, %v1810
        %v1829 = vadd.f32 %v1683, %v1815
        %v1830 = vadd.f32 %v1684, %v1820
        %s1831 = scalar_lea.vmem [#allocation3], 32
        %v1832 = vld [vmem:[%s1831] sm:$0xff]
        %v1833 = vld [vmem:[%s1831 + $0x8] sm:$0xff]
        %v1834 = vld [vmem:[%s1831 + $0x10] sm:$0xff]
        %v1835 = vld [vmem:[%s1831 + $0x18] sm:$0xff]
        %v1836 = vld [vmem:[%s1831 + $0x20] sm:$0xff]
        %v1837 = vld [vmem:[%s1831 + $0x28] sm:$0xff]
        %v1838 = vld [vmem:[%s1831 + $0x30] sm:$0xff]
        %v1839 = vld [vmem:[%s1831 + $0x38] sm:$0xff]
        %v1841 = vsel %vm1245, %v1832, 0
        %v1844 = vsel %vm1245, %v1833, 0
        %v1847 = vsel %vm1245, %v1834, 0
        %v1850 = vsel %vm1245, %v1835, 0
        %v1853 = vsel %vm1245, %v1836, 0
        %v1856 = vsel %vm1245, %v1837, 0
        %v1859 = vsel %vm1245, %v1838, 0
        %v1862 = vsel %vm1245, %v1839, 0
        %1864 = vmatprep.subr.mxu0 0.0
        %1865 = vmatpush1.msra.mxu0 %v1264
        %1866 = vmatprep.subr.mxu0 0.0
        %1867 = vmatpush1.msra.mxu0 0.0
        %1868 = vmatprep.subr.mxu0 0.0
        %1869 = vmatpush1.msra.mxu0 0.0
        %1870 = vmatprep.subr.mxu0 0.0
        %1871 = vmatpush1.msra.mxu0 0.0
        %1872 = vmatprep.subr.mxu0 0.0
        %1873 = vmatpush1.msra.mxu0 0.0
        %1874 = vmatprep.subr.mxu0 0.0
        %1875 = vmatpush1.msra.mxu0 0.0
        %1876 = vmatprep.subr.mxu0 0.0
        %1877 = vmatpush1.msra.mxu0 0.0
        %1878 = vmatprep.subr.mxu0 0.0
        %1879 = vmatpush1.msra.mxu0 0.0
        %1880 = vmatprep.subr.mxu0 0.0
        %1881 = vmatpush1.msra.mxu0 0.0
        %1882 = vmatprep.subr.mxu0 0.0
        %1883 = vmatpush1.msra.mxu0 0.0
        %1884 = vmatprep.subr.mxu0 0.0
        %1885 = vmatpush1.msra.mxu0 0.0
        %1886 = vmatprep.subr.mxu0 0.0
        %1887 = vmatpush1.msra.mxu0 0.0
        %1888 = vmatprep.subr.mxu0 0.0
        %1889 = vmatpush1.msra.mxu0 0.0
        %1890 = vmatprep.subr.mxu0 0.0
        %1891 = vmatpush1.msra.mxu0 0.0
        %1892 = vmatprep.subr.mxu0 0.0
        %1893 = vmatpush1.msra.mxu0 0.0
        %1894 = vmatprep.subr.mxu0 0.0
        %1895 = vmatpush1.msra.mxu0 0.0
        %1896 = vmatprep.subr.mxu0 0.0
        %1897 = vmatpush1.msra.mxu0 0.0
        %1898 = vmatprep.subr.mxu0 0.0
        %1899 = vmatpush1.msra.mxu0 0.0
        %1900 = vmatprep.subr.mxu0 0.0
        %1901 = vmatpush1.msra.mxu0 0.0
        %1902 = vmatprep.subr.mxu0 0.0
        %1903 = vmatpush1.msra.mxu0 0.0
        %1904 = vmatprep.subr.mxu0 0.0
        %1905 = vmatpush1.msra.mxu0 0.0
        %1906 = vmatprep.subr.mxu0 0.0
        %1907 = vmatpush1.msra.mxu0 0.0
        %1908 = vmatprep.subr.mxu0 0.0
        %1909 = vmatpush1.msra.mxu0 0.0
        %1910 = vmatprep.subr.mxu0 0.0
        %1911 = vmatpush1.msra.mxu0 0.0
        %1912 = vmatprep.subr.mxu0 0.0
        %1913 = vmatpush1.msra.mxu0 0.0
        %1914 = vmatprep.subr.mxu0 0.0
        %1915 = vmatpush1.msra.mxu0 0.0
        %1916 = vmatprep.subr.mxu0 0.0
        %1917 = vmatpush1.msra.mxu0 0.0
        %1918 = vmatprep.subr.mxu0 0.0
        %1919 = vmatpush1.msra.mxu0 0.0
        %1920 = vmatprep.subr.mxu0 0.0
        %1921 = vmatpush1.msra.mxu0 0.0
        %1922 = vmatprep.subr.mxu0 0.0
        %1923 = vmatpush1.msra.mxu0 0.0
        %1924 = vmatprep.subr.mxu0 0.0
        %1925 = vmatpush1.msra.mxu0 0.0
        %1926 = vmatprep.subr.mxu0 0.0
        %1927 = vmatpush1.msra.mxu0 0.0
        %1928 = vmatprep.mubr.f32.mxu0 0.0
        %1929 = vmatmul.mubr.f32.gmra.mrb[0].mxu0 %v1841
        %v1930 = vpop.f32.mrb[0].mxu0
        %v1931 = vadd.f32 0.0, %v1930
        %v1932 = vpop.f32.mrb[0].mxu0
        %1933 = vmatprep.mubr.f32.mxu0 0.0
        %1934 = vmatmul.mubr.f32.gmra.mrb[0].mxu0 %v1844
        %v1935 = vpop.f32.mrb[0].mxu0
        %v1936 = vadd.f32 0.0, %v1935
        %v1937 = vpop.f32.mrb[0].mxu0
        %1938 = vmatprep.mubr.f32.mxu0 0.0
        %1939 = vmatmul.mubr.f32.gmra.mrb[0].mxu0 %v1847
        %v1940 = vpop.f32.mrb[0].mxu0
        %v1941 = vadd.f32 0.0, %v1940
        %v1942 = vpop.f32.mrb[0].mxu0
        %1943 = vmatprep.mubr.f32.mxu0 0.0
        %1944 = vmatmul.mubr.f32.gmra.mrb[0].mxu0 %v1850
        %v1945 = vpop.f32.mrb[0].mxu0
        %v1946 = vadd.f32 0.0, %v1945
        %v1947 = vpop.f32.mrb[0].mxu0
        %1948 = vmatprep.mubr.f32.mxu0 0.0
        %1949 = vmatmul.mubr.f32.gmra.mrb[0].mxu0 %v1853
        %v1950 = vpop.f32.mrb[0].mxu0
        %v1951 = vadd.f32 0.0, %v1950
        %v1952 = vpop.f32.mrb[0].mxu0
        %1953 = vmatprep.mubr.f32.mxu0 0.0
        %1954 = vmatmul.mubr.f32.gmra.mrb[0].mxu0 %v1856
        %v1955 = vpop.f32.mrb[0].mxu0
        %v1956 = vadd.f32 0.0, %v1955
        %v1957 = vpop.f32.mrb[0].mxu0
        %1958 = vmatprep.mubr.f32.mxu0 0.0
        %1959 = vmatmul.mubr.f32.gmra.mrb[0].mxu0 %v1859
        %v1960 = vpop.f32.mrb[0].mxu0
        %v1961 = vadd.f32 0.0, %v1960
        %v1962 = vpop.f32.mrb[0].mxu0
        %1963 = vmatprep.mubr.f32.mxu0 0.0
        %1964 = vmatmul.mubr.f32.gmra.mrb[0].mxu0 %v1862
        %v1965 = vpop.f32.mrb[0].mxu0
        %v1966 = vadd.f32 0.0, %v1965
        %v1967 = vpop.f32.mrb[0].mxu0
        %1968 = vdwg.mxu0
        %v1969 = vadd.f32 %v1823, %v1931
        %v1970 = vadd.f32 %v1824, %v1936
        %v1971 = vadd.f32 %v1825, %v1941
        %v1972 = vadd.f32 %v1826, %v1946
        %v1973 = vadd.f32 %v1827, %v1951
        %v1974 = vadd.f32 %v1828, %v1956
        %v1975 = vadd.f32 %v1829, %v1961
        %v1976 = vadd.f32 %v1830, %v1966
        %v1977 = vld [vmem:[%s4] sm:$0x1]
        %v1979 = vlaneseq
        %v1980 = vshrl.u32 %v1979, 7
        %v1981 = vsub.s32 0, %v1980
        %v1982 = vrot.slane %v1977, %v1981
        %v1984 = vadd.f32 %v1969, %v1982
        %v1985 = vadd.f32 %v1970, %v1982
        %v1986 = vadd.f32 %v1971, %v1982
        %v1987 = vadd.f32 %v1972, %v1982
        %v1988 = vadd.f32 %v1973, %v1982
        %v1989 = vadd.f32 %v1974, %v1982
        %v1990 = vadd.f32 %v1975, %v1982
        %v1991 = vadd.f32 %v1976, %v1982
        %v1992 = vmax.f32 %v1984, %v1985
        %v1993 = vmax.f32 %v1986, %v1987
        %v1994 = vmax.f32 %v1988, %v1989
        %v1995 = vmax.f32 %v1990, %v1991
        %v1996 = vmul.f32 %v1992, 0.2
        %v1997 = vmul.f32 %v1993, 0.2
        %v1998 = vmul.f32 %v1994, 0.2
        %v1999 = vmul.f32 %v1995, 0.2
        %v2000 = vmax.f32 %v1992, %v1996
        %v2001 = vmax.f32 %v1993, %v1997
        %v2002 = vmax.f32 %v1994, %v1998
        %v2003 = vmax.f32 %v1995, %v1999
        %v2004 = vld [vmem:[%s5] sm:$0xff]
        %v2005 = vld [vmem:[%s5 + $0x8] sm:$0xff]
        %v2006 = vld [vmem:[%s5 + $0x10] sm:$0xff]
        %v2007 = vld [vmem:[%s5 + $0x18] sm:$0xff]
        %v2008 = vld [vmem:[%s6] sm:$0x1]
        %v2010 = vlaneseq
        %v2011 = vshrl.u32 %v2010, 7
        %v2012 = vsub.s32 0, %v2011
        %v2013 = vrot.slane %v2008, %v2012
        %v2015 = vadd.f32 %v2013, 0.0
        %v2017 = vsel %vm1245, %v2000, 0
        %2019 = vmatprep.subr.mxu0 0.0
        %2020 = vmatpush1.msra.mxu0 %v2004
        %2021 = vmatprep.subr.mxu0 0.0
        %2022 = vmatpush1.msra.mxu0 0.0
        %2023 = vmatprep.subr.mxu0 0.0
        %2024 = vmatpush1.msra.mxu0 0.0
        %2025 = vmatprep.subr.mxu0 0.0
        %2026 = vmatpush1.msra.mxu0 0.0
        %2027 = vmatprep.subr.mxu0 0.0
        %2028 = vmatpush1.msra.mxu0 0.0
        %2029 = vmatprep.subr.mxu0 0.0
        %2030 = vmatpush1.msra.mxu0 0.0
        %2031 = vmatprep.subr.mxu0 0.0
        %2032 = vmatpush1.msra.mxu0 0.0
        %2033 = vmatprep.subr.mxu0 0.0
        %2034 = vmatpush1.msra.mxu0 0.0
        %2035 = vmatprep.subr.mxu0 0.0
        %2036 = vmatpush1.msra.mxu0 0.0
        %2037 = vmatprep.subr.mxu0 0.0
        %2038 = vmatpush1.msra.mxu0 0.0
        %2039 = vmatprep.subr.mxu0 0.0
        %2040 = vmatpush1.msra.mxu0 0.0
        %2041 = vmatprep.subr.mxu0 0.0
        %2042 = vmatpush1.msra.mxu0 0.0
        %2043 = vmatprep.subr.mxu0 0.0
        %2044 = vmatpush1.msra.mxu0 0.0
        %2045 = vmatprep.subr.mxu0 0.0
        %2046 = vmatpush1.msra.mxu0 0.0
        %2047 = vmatprep.subr.mxu0 0.0
        %2048 = vmatpush1.msra.mxu0 0.0
        %2049 = vmatprep.subr.mxu0 0.0
        %2050 = vmatpush1.msra.mxu0 0.0
        %2051 = vmatprep.subr.mxu0 0.0
        %2052 = vmatpush1.msra.mxu0 0.0
        %2053 = vmatprep.subr.mxu0 0.0
        %2054 = vmatpush1.msra.mxu0 0.0
        %2055 = vmatprep.subr.mxu0 0.0
        %2056 = vmatpush1.msra.mxu0 0.0
        %2057 = vmatprep.subr.mxu0 0.0
        %2058 = vmatpush1.msra.mxu0 0.0
        %2059 = vmatprep.subr.mxu0 0.0
        %2060 = vmatpush1.msra.mxu0 0.0
        %2061 = vmatprep.subr.mxu0 0.0
        %2062 = vmatpush1.msra.mxu0 0.0
        %2063 = vmatprep.subr.mxu0 0.0
        %2064 = vmatpush1.msra.mxu0 0.0
        %2065 = vmatprep.subr.mxu0 0.0
        %2066 = vmatpush1.msra.mxu0 0.0
        %2067 = vmatprep.subr.mxu0 0.0
        %2068 = vmatpush1.msra.mxu0 0.0
        %2069 = vmatprep.subr.mxu0 0.0
        %2070 = vmatpush1.msra.mxu0 0.0
        %2071 = vmatprep.subr.mxu0 0.0
        %2072 = vmatpush1.msra.mxu0 0.0
        %2073 = vmatprep.subr.mxu0 0.0
        %2074 = vmatpush1.msra.mxu0 0.0
        %2075 = vmatprep.subr.mxu0 0.0
        %2076 = vmatpush1.msra.mxu0 0.0
        %2077 = vmatprep.subr.mxu0 0.0
        %2078 = vmatpush1.msra.mxu0 0.0
        %2079 = vmatprep.subr.mxu0 0.0
        %2080 = vmatpush1.msra.mxu0 0.0
        %2081 = vmatprep.subr.mxu0 0.0
        %2082 = vmatpush1.msra.mxu0 0.0
        %2083 = vmatprep.mubr.f32.mxu0 0.0
        %2084 = vmatmul.mubr.f32.gmra.mrb[0].mxu0 %v2017
        %v2085 = vpop.f32.mrb[0].mxu0
        %v2086 = vadd.f32 0.0, %v2085
        %v2087 = vpop.f32.mrb[0].mxu0
        %2088 = vdwg.mxu0
        %v2089 = vadd.f32 %v2015, %v2086
        %v2091 = vsel %vm1245, %v2001, 0
        %2093 = vmatprep.subr.mxu0 0.0
        %2094 = vmatpush1.msra.mxu0 %v2005
        %2095 = vmatprep.subr.mxu0 0.0
        %2096 = vmatpush1.msra.mxu0 0.0
        %2097 = vmatprep.subr.mxu0 0.0
        %2098 = vmatpush1.msra.mxu0 0.0
        %2099 = vmatprep.subr.mxu0 0.0
        %2100 = vmatpush1.msra.mxu0 0.0
        %2101 = vmatprep.subr.mxu0 0.0
        %2102 = vmatpush1.msra.mxu0 0.0
        %2103 = vmatprep.subr.mxu0 0.0
        %2104 = vmatpush1.msra.mxu0 0.0
        %2105 = vmatprep.subr.mxu0 0.0
        %2106 = vmatpush1.msra.mxu0 0.0
        %2107 = vmatprep.subr.mxu0 0.0
        %2108 = vmatpush1.msra.mxu0 0.0
        %2109 = vmatprep.subr.mxu0 0.0
        %2110 = vmatpush1.msra.mxu0 0.0
        %2111 = vmatprep.subr.mxu0 0.0
        %2112 = vmatpush1.msra.mxu0 0.0
        %2113 = vmatprep.subr.mxu0 0.0
        %2114 = vmatpush1.msra.mxu0 0.0
        %2115 = vmatprep.subr.mxu0 0.0
        %2116 = vmatpush1.msra.mxu0 0.0
        %2117 = vmatprep.subr.mxu0 0.0
        %2118 = vmatpush1.msra.mxu0 0.0
        %2119 = vmatprep.subr.mxu0 0.0
        %2120 = vmatpush1.msra.mxu0 0.0
        %2121 = vmatprep.subr.mxu0 0.0
        %2122 = vmatpush1.msra.mxu0 0.0
        %2123 = vmatprep.subr.mxu0 0.0
        %2124 = vmatpush1.msra.mxu0 0.0
        %2125 = vmatprep.subr.mxu0 0.0
        %2126 = vmatpush1.msra.mxu0 0.0
        %2127 = vmatprep.subr.mxu0 0.0
        %2128 = vmatpush1.msra.mxu0 0.0
        %2129 = vmatprep.subr.mxu0 0.0
        %2130 = vmatpush1.msra.mxu0 0.0
        %2131 = vmatprep.subr.mxu0 0.0
        %2132 = vmatpush1.msra.mxu0 0.0
        %2133 = vmatprep.subr.mxu0 0.0
        %2134 = vmatpush1.msra.mxu0 0.0
        %2135 = vmatprep.subr.mxu0 0.0
        %2136 = vmatpush1.msra.mxu0 0.0
        %2137 = vmatprep.subr.mxu0 0.0
        %2138 = vmatpush1.msra.mxu0 0.0
        %2139 = vmatprep.subr.mxu0 0.0
        %2140 = vmatpush1.msra.mxu0 0.0
        %2141 = vmatprep.subr.mxu0 0.0
        %2142 = vmatpush1.msra.mxu0 0.0
        %2143 = vmatprep.subr.mxu0 0.0
        %2144 = vmatpush1.msra.mxu0 0.0
        %2145 = vmatprep.subr.mxu0 0.0
        %2146 = vmatpush1.msra.mxu0 0.0
        %2147 = vmatprep.subr.mxu0 0.0
        %2148 = vmatpush1.msra.mxu0 0.0
        %2149 = vmatprep.subr.mxu0 0.0
        %2150 = vmatpush1.msra.mxu0 0.0
        %2151 = vmatprep.subr.mxu0 0.0
        %2152 = vmatpush1.msra.mxu0 0.0
        %2153 = vmatprep.subr.mxu0 0.0
        %2154 = vmatpush1.msra.mxu0 0.0
        %2155 = vmatprep.subr.mxu0 0.0
        %2156 = vmatpush1.msra.mxu0 0.0
        %2157 = vmatprep.mubr.f32.mxu0 0.0
        %2158 = vmatmul.mubr.f32.gmra.mrb[0].mxu0 %v2091
        %v2159 = vpop.f32.mrb[0].mxu0
        %v2160 = vadd.f32 0.0, %v2159
        %v2161 = vpop.f32.mrb[0].mxu0
        %2162 = vdwg.mxu0
        %v2163 = vadd.f32 %v2089, %v2160
        %v2165 = vsel %vm1245, %v2002, 0
        %2167 = vmatprep.subr.mxu0 0.0
        %2168 = vmatpush1.msra.mxu0 %v2006
        %2169 = vmatprep.subr.mxu0 0.0
        %2170 = vmatpush1.msra.mxu0 0.0
        %2171 = vmatprep.subr.mxu0 0.0
        %2172 = vmatpush1.msra.mxu0 0.0
        %2173 = vmatprep.subr.mxu0 0.0
        %2174 = vmatpush1.msra.mxu0 0.0
        %2175 = vmatprep.subr.mxu0 0.0
        %2176 = vmatpush1.msra.mxu0 0.0
        %2177 = vmatprep.subr.mxu0 0.0
        %2178 = vmatpush1.msra.mxu0 0.0
        %2179 = vmatprep.subr.mxu0 0.0
        %2180 = vmatpush1.msra.mxu0 0.0
        %2181 = vmatprep.subr.mxu0 0.0
        %2182 = vmatpush1.msra.mxu0 0.0
        %2183 = vmatprep.subr.mxu0 0.0
        %2184 = vmatpush1.msra.mxu0 0.0
        %2185 = vmatprep.subr.mxu0 0.0
        %2186 = vmatpush1.msra.mxu0 0.0
        %2187 = vmatprep.subr.mxu0 0.0
        %2188 = vmatpush1.msra.mxu0 0.0
        %2189 = vmatprep.subr.mxu0 0.0
        %2190 = vmatpush1.msra.mxu0 0.0
        %2191 = vmatprep.subr.mxu0 0.0
        %2192 = vmatpush1.msra.mxu0 0.0
        %2193 = vmatprep.subr.mxu0 0.0
        %2194 = vmatpush1.msra.mxu0 0.0
        %2195 = vmatprep.subr.mxu0 0.0
        %2196 = vmatpush1.msra.mxu0 0.0
        %2197 = vmatprep.subr.mxu0 0.0
        %2198 = vmatpush1.msra.mxu0 0.0
        %2199 = vmatprep.subr.mxu0 0.0
        %2200 = vmatpush1.msra.mxu0 0.0
        %2201 = vmatprep.subr.mxu0 0.0
        %2202 = vmatpush1.msra.mxu0 0.0
        %2203 = vmatprep.subr.mxu0 0.0
        %2204 = vmatpush1.msra.mxu0 0.0
        %2205 = vmatprep.subr.mxu0 0.0
        %2206 = vmatpush1.msra.mxu0 0.0
        %2207 = vmatprep.subr.mxu0 0.0
        %2208 = vmatpush1.msra.mxu0 0.0
        %2209 = vmatprep.subr.mxu0 0.0
        %2210 = vmatpush1.msra.mxu0 0.0
        %2211 = vmatprep.subr.mxu0 0.0
        %2212 = vmatpush1.msra.mxu0 0.0
        %2213 = vmatprep.subr.mxu0 0.0
        %2214 = vmatpush1.msra.mxu0 0.0
        %2215 = vmatprep.subr.mxu0 0.0
        %2216 = vmatpush1.msra.mxu0 0.0
        %2217 = vmatprep.subr.mxu0 0.0
        %2218 = vmatpush1.msra.mxu0 0.0
        %2219 = vmatprep.subr.mxu0 0.0
        %2220 = vmatpush1.msra.mxu0 0.0
        %2221 = vmatprep.subr.mxu0 0.0
        %2222 = vmatpush1.msra.mxu0 0.0
        %2223 = vmatprep.subr.mxu0 0.0
        %2224 = vmatpush1.msra.mxu0 0.0
        %2225 = vmatprep.subr.mxu0 0.0
        %2226 = vmatpush1.msra.mxu0 0.0
        %2227 = vmatprep.subr.mxu0 0.0
        %2228 = vmatpush1.msra.mxu0 0.0
        %2229 = vmatprep.subr.mxu0 0.0
        %2230 = vmatpush1.msra.mxu0 0.0
        %2231 = vmatprep.mubr.f32.mxu0 0.0
        %2232 = vmatmul.mubr.f32.gmra.mrb[0].mxu0 %v2165
        %v2233 = vpop.f32.mrb[0].mxu0
        %v2234 = vadd.f32 0.0, %v2233
        %v2235 = vpop.f32.mrb[0].mxu0
        %2236 = vdwg.mxu0
        %v2237 = vadd.f32 %v2163, %v2234
        %v2239 = vsel %vm1245, %v2003, 0
        %2241 = vmatprep.subr.mxu0 0.0
        %2242 = vmatpush1.msra.mxu0 %v2007
        %2243 = vmatprep.subr.mxu0 0.0
        %2244 = vmatpush1.msra.mxu0 0.0
        %2245 = vmatprep.subr.mxu0 0.0
        %2246 = vmatpush1.msra.mxu0 0.0
        %2247 = vmatprep.subr.mxu0 0.0
        %2248 = vmatpush1.msra.mxu0 0.0
        %2249 = vmatprep.subr.mxu0 0.0
        %2250 = vmatpush1.msra.mxu0 0.0
        %2251 = vmatprep.subr.mxu0 0.0
        %2252 = vmatpush1.msra.mxu0 0.0
        %2253 = vmatprep.subr.mxu0 0.0
        %2254 = vmatpush1.msra.mxu0 0.0
        %2255 = vmatprep.subr.mxu0 0.0
        %2256 = vmatpush1.msra.mxu0 0.0
        %2257 = vmatprep.subr.mxu0 0.0
        %2258 = vmatpush1.msra.mxu0 0.0
        %2259 = vmatprep.subr.mxu0 0.0
        %2260 = vmatpush1.msra.mxu0 0.0
        %2261 = vmatprep.subr.mxu0 0.0
        %2262 = vmatpush1.msra.mxu0 0.0
        %2263 = vmatprep.subr.mxu0 0.0
        %2264 = vmatpush1.msra.mxu0 0.0
        %2265 = vmatprep.subr.mxu0 0.0
        %2266 = vmatpush1.msra.mxu0 0.0
        %2267 = vmatprep.subr.mxu0 0.0
        %2268 = vmatpush1.msra.mxu0 0.0
        %2269 = vmatprep.subr.mxu0 0.0
        %2270 = vmatpush1.msra.mxu0 0.0
        %2271 = vmatprep.subr.mxu0 0.0
        %2272 = vmatpush1.msra.mxu0 0.0
        %2273 = vmatprep.subr.mxu0 0.0
        %2274 = vmatpush1.msra.mxu0 0.0
        %2275 = vmatprep.subr.mxu0 0.0
        %2276 = vmatpush1.msra.mxu0 0.0
        %2277 = vmatprep.subr.mxu0 0.0
        %2278 = vmatpush1.msra.mxu0 0.0
        %2279 = vmatprep.subr.mxu0 0.0
        %2280 = vmatpush1.msra.mxu0 0.0
        %2281 = vmatprep.subr.mxu0 0.0
        %2282 = vmatpush1.msra.mxu0 0.0
        %2283 = vmatprep.subr.mxu0 0.0
        %2284 = vmatpush1.msra.mxu0 0.0
        %2285 = vmatprep.subr.mxu0 0.0
        %2286 = vmatpush1.msra.mxu0 0.0
        %2287 = vmatprep.subr.mxu0 0.0
        %2288 = vmatpush1.msra.mxu0 0.0
        %2289 = vmatprep.subr.mxu0 0.0
        %2290 = vmatpush1.msra.mxu0 0.0
        %2291 = vmatprep.subr.mxu0 0.0
        %2292 = vmatpush1.msra.mxu0 0.0
        %2293 = vmatprep.subr.mxu0 0.0
        %2294 = vmatpush1.msra.mxu0 0.0
        %2295 = vmatprep.subr.mxu0 0.0
        %2296 = vmatpush1.msra.mxu0 0.0
        %2297 = vmatprep.subr.mxu0 0.0
        %2298 = vmatpush1.msra.mxu0 0.0
        %2299 = vmatprep.subr.mxu0 0.0
        %2300 = vmatpush1.msra.mxu0 0.0
        %2301 = vmatprep.subr.mxu0 0.0
        %2302 = vmatpush1.msra.mxu0 0.0
        %2303 = vmatprep.subr.mxu0 0.0
        %2304 = vmatpush1.msra.mxu0 0.0
        %2305 = vmatprep.mubr.f32.mxu0 0.0
        %2306 = vmatmul.mubr.f32.gmra.mrb[0].mxu0 %v2239
        %v2307 = vpop.f32.mrb[0].mxu0
        %v2308 = vadd.f32 0.0, %v2307
        %v2309 = vpop.f32.mrb[0].mxu0
        %2310 = vdwg.mxu0
        %v2311 = vadd.f32 %v2237, %v2308
        %v2312 = vmul.f32 %v2311, 0.2
        %v2313 = vmax.f32 %v2311, %v2312
        %v2314 = vld [vmem:[%s7] sm:$0xff]
        %v2315 = vld [vmem:[%s7 + $0x8] sm:$0xff]
        %v2316 = vld [vmem:[%s8] sm:$0x1]
        %v2318 = vlaneseq
        %v2319 = vshrl.u32 %v2318, 7
        %v2320 = vsub.s32 0, %v2319
        %v2321 = vrot.slane %v2316, %v2320
        %vm2323 = vcmask 130048
        %v2325 = vsel %vm2323, %v2313, 0
        %2327 = vmatprep.subr.mxu0 0.0
        %2328 = vmatpush1.msra.mxu0 %v2314
        %2329 = vmatprep.subr.mxu0 0.0
        %2330 = vmatpush1.msra.mxu0 %v2315
        %2331 = vmatprep.subr.mxu0 0.0
        %2332 = vmatpush1.msra.mxu0 0.0
        %2333 = vmatprep.subr.mxu0 0.0
        %2334 = vmatpush1.msra.mxu0 0.0
        %2335 = vmatprep.subr.mxu0 0.0
        %2336 = vmatpush1.msra.mxu0 0.0
        %2337 = vmatprep.subr.mxu0 0.0
        %2338 = vmatpush1.msra.mxu0 0.0
        %2339 = vmatprep.subr.mxu0 0.0
        %2340 = vmatpush1.msra.mxu0 0.0
        %2341 = vmatprep.subr.mxu0 0.0
        %2342 = vmatpush1.msra.mxu0 0.0
        %2343 = vmatprep.subr.mxu0 0.0
        %2344 = vmatpush1.msra.mxu0 0.0
        %2345 = vmatprep.subr.mxu0 0.0
        %2346 = vmatpush1.msra.mxu0 0.0
        %2347 = vmatprep.subr.mxu0 0.0
        %2348 = vmatpush1.msra.mxu0 0.0
        %2349 = vmatprep.subr.mxu0 0.0
        %2350 = vmatpush1.msra.mxu0 0.0
        %2351 = vmatprep.subr.mxu0 0.0
        %2352 = vmatpush1.msra.mxu0 0.0
        %2353 = vmatprep.subr.mxu0 0.0
        %2354 = vmatpush1.msra.mxu0 0.0
        %2355 = vmatprep.subr.mxu0 0.0
        %2356 = vmatpush1.msra.mxu0 0.0
        %2357 = vmatprep.subr.mxu0 0.0
        %2358 = vmatpush1.msra.mxu0 0.0
        %2359 = vmatprep.subr.mxu0 0.0
        %2360 = vmatpush1.msra.mxu0 0.0
        %2361 = vmatprep.subr.mxu0 0.0
        %2362 = vmatpush1.msra.mxu0 0.0
        %2363 = vmatprep.subr.mxu0 0.0
        %2364 = vmatpush1.msra.mxu0 0.0
        %2365 = vmatprep.subr.mxu0 0.0
        %2366 = vmatpush1.msra.mxu0 0.0
        %2367 = vmatprep.subr.mxu0 0.0
        %2368 = vmatpush1.msra.mxu0 0.0
        %2369 = vmatprep.subr.mxu0 0.0
        %2370 = vmatpush1.msra.mxu0 0.0
        %2371 = vmatprep.subr.mxu0 0.0
        %2372 = vmatpush1.msra.mxu0 0.0
        %2373 = vmatprep.subr.mxu0 0.0
        %2374 = vmatpush1.msra.mxu0 0.0
        %2375 = vmatprep.subr.mxu0 0.0
        %2376 = vmatpush1.msra.mxu0 0.0
        %2377 = vmatprep.subr.mxu0 0.0
        %2378 = vmatpush1.msra.mxu0 0.0
        %2379 = vmatprep.subr.mxu0 0.0
        %2380 = vmatpush1.msra.mxu0 0.0
        %2381 = vmatprep.subr.mxu0 0.0
        %2382 = vmatpush1.msra.mxu0 0.0
        %2383 = vmatprep.subr.mxu0 0.0
        %2384 = vmatpush1.msra.mxu0 0.0
        %2385 = vmatprep.subr.mxu0 0.0
        %2386 = vmatpush1.msra.mxu0 0.0
        %2387 = vmatprep.subr.mxu0 0.0
        %2388 = vmatpush1.msra.mxu0 0.0
        %2389 = vmatprep.subr.mxu0 0.0
        %2390 = vmatpush1.msra.mxu0 0.0
        %2391 = vmatprep.mubr.f32.mxu0 0.0
        %2392 = vmatmul.mubr.f32.gmra.mrb[0].mxu0 %v2325
        %v2393 = vpop.f32.mrb[0].mxu0
        %v2394 = vadd.f32 %v2321, %v2393
        %v2395 = vpop.f32.mrb[0].mxu0
        %2396 = vdwg.mxu0
        %v2397 = vmul.f32 %v2394, 0.2
        %v2398 = vmax.f32 %v2394, %v2397
        %v2399 = vld [vmem:[%s9] sm:$0xff]
        %v2400 = vld [vmem:[#allocation4] sm:$0x1]
        %v2402 = vlaneseq
        %v2403 = vshrl.u32 %v2402, 7
        %v2404 = vsub.s32 0, %v2403
        %v2405 = vrot.slane %v2400, %v2404
        %v2408 = vsel %vm1245, %v2398, 0
        %2410 = vmatprep.subr.mxu0 0.0
        %2411 = vmatpush1.msra.mxu0 %v2399
        %2412 = vmatprep.subr.mxu0 0.0
        %2413 = vmatpush1.msra.mxu0 0.0
        %2414 = vmatprep.subr.mxu0 0.0
        %2415 = vmatpush1.msra.mxu0 0.0
        %2416 = vmatprep.subr.mxu0 0.0
        %2417 = vmatpush1.msra.mxu0 0.0
        %2418 = vmatprep.subr.mxu0 0.0
        %2419 = vmatpush1.msra.mxu0 0.0
        %2420 = vmatprep.subr.mxu0 0.0
        %2421 = vmatpush1.msra.mxu0 0.0
        %2422 = vmatprep.subr.mxu0 0.0
        %2423 = vmatpush1.msra.mxu0 0.0
        %2424 = vmatprep.subr.mxu0 0.0
        %2425 = vmatpush1.msra.mxu0 0.0
        %2426 = vmatprep.subr.mxu0 0.0
        %2427 = vmatpush1.msra.mxu0 0.0
        %2428 = vmatprep.subr.mxu0 0.0
        %2429 = vmatpush1.msra.mxu0 0.0
        %2430 = vmatprep.subr.mxu0 0.0
        %2431 = vmatpush1.msra.mxu0 0.0
        %2432 = vmatprep.subr.mxu0 0.0
        %2433 = vmatpush1.msra.mxu0 0.0
        %2434 = vmatprep.subr.mxu0 0.0
        %2435 = vmatpush1.msra.mxu0 0.0
        %2436 = vmatprep.subr.mxu0 0.0
        %2437 = vmatpush1.msra.mxu0 0.0
        %2438 = vmatprep.subr.mxu0 0.0
        %2439 = vmatpush1.msra.mxu0 0.0
        %2440 = vmatprep.subr.mxu0 0.0
        %2441 = vmatpush1.msra.mxu0 0.0
        %2442 = vmatprep.subr.mxu0 0.0
        %2443 = vmatpush1.msra.mxu0 0.0
        %2444 = vmatprep.subr.mxu0 0.0
        %2445 = vmatpush1.msra.mxu0 0.0
        %2446 = vmatprep.subr.mxu0 0.0
        %2447 = vmatpush1.msra.mxu0 0.0
        %2448 = vmatprep.subr.mxu0 0.0
        %2449 = vmatpush1.msra.mxu0 0.0
        %2450 = vmatprep.subr.mxu0 0.0
        %2451 = vmatpush1.msra.mxu0 0.0
        %2452 = vmatprep.subr.mxu0 0.0
        %2453 = vmatpush1.msra.mxu0 0.0
        %2454 = vmatprep.subr.mxu0 0.0
        %2455 = vmatpush1.msra.mxu0 0.0
        %2456 = vmatprep.subr.mxu0 0.0
        %2457 = vmatpush1.msra.mxu0 0.0
        %2458 = vmatprep.subr.mxu0 0.0
        %2459 = vmatpush1.msra.mxu0 0.0
        %2460 = vmatprep.subr.mxu0 0.0
        %2461 = vmatpush1.msra.mxu0 0.0
        %2462 = vmatprep.subr.mxu0 0.0
        %2463 = vmatpush1.msra.mxu0 0.0
        %2464 = vmatprep.subr.mxu0 0.0
        %2465 = vmatpush1.msra.mxu0 0.0
        %2466 = vmatprep.subr.mxu0 0.0
        %2467 = vmatpush1.msra.mxu0 0.0
        %2468 = vmatprep.subr.mxu0 0.0
        %2469 = vmatpush1.msra.mxu0 0.0
        %2470 = vmatprep.subr.mxu0 0.0
        %2471 = vmatpush1.msra.mxu0 0.0
        %2472 = vmatprep.subr.mxu0 0.0
        %2473 = vmatpush1.msra.mxu0 0.0
        %2474 = vmatprep.mubr.f32.mxu0 0.0
        %2475 = vmatmul.mubr.f32.gmra.mrb[0].mxu0 %v2408
        %v2476 = vpop.f32.mrb[0].mxu0
        %v2477 = vadd.f32 %v2405, %v2476
        %v2478 = vpop.f32.mrb[0].mxu0
        %2479 = vdwg.mxu0
        %2480 = vst.msk [vmem:[%s480] sm:$0xff] %vm497, %v2477
        %p2481 = scmp.lt.s32.totalorder %s24, 1
        %s2482 = scalar_select %p2481, %s24, 1
        %s2483 = smul.addr %s2482, 8
        %s2484 = scalar_lea.vmem %s11, %s2483
        // Predicated region
        $region103: #{tpu_custom_call.1} parent=97 // pred_check
          %p2485 = pneg %p278
        $region104: #{tpu_custom_call.1} parent=97 // pred_check_branch
          %2487 = sbr.rel (%p2485) target = $region106
        $region105: #{tpu_custom_call.1} parent=97 // pred_region
          _
        $region106: #{tpu_custom_call.1} parent=97 // pred_fallthru
          _
      $region98: #{tpu_custom_call.1} parent=5 // pred_fallthru
        _
      %p2488 = scmp.le.s32.totalorder 2, %s19
      // Predicated region
      $region107: #{tpu_custom_call.1} parent=5 // pred_check
        %p2489 = pneg %p2488
      $region108: #{tpu_custom_call.1} parent=5 // pred_check_branch
        %2491 = sbr.rel (%p2489) target = $region110
      $region109: #{tpu_custom_call.1} parent=5 // pred_region
        %s2492 = ssub.s32 %s19, 2
        // Predicated region
        $region111: #{tpu_custom_call.1} parent=109 // pred_check
          %p2493 = pneg %p284
        $region112: #{tpu_custom_call.1} parent=109 // pred_check_branch
          %2495 = sbr.rel (%p2493) target = $region114
        $region113: #{tpu_custom_call.1} parent=109 // pred_region
          %p2496 = scmp.lt.s32.totalorder %s25, 1
          %s2497 = scalar_select %p2496, %s25, 1
          %s2498 = smul.addr %s2497, 8
          %s2499 = scalar_lea.vmem %s11, %s2498
        $region114: #{tpu_custom_call.1} parent=109 // pred_fallthru
          _
      $region110: #{tpu_custom_call.1} parent=5 // pred_fallthru
        _
    $region6: #{tpu_custom_call.1} parent=1 // loop_footer
      %s23 = sadd.s32 1, %s19
    $region7: #{tpu_custom_call.1} parent=1 // loop_footer_branch
      %18 = sbr.rel target = $region3
    $region8: #{tpu_custom_call.1} parent=1 // loop_exit
      _

</llo_original>
